<compile_context>
chip_gen: v7x
topology: tpu7x:2x2x1
jax: 0.10.0
libtpu: 0.0.40
codegen_flags: <defaults>
</compile_context>

<pallas_src>
import numpy as np
import jax
import jax.numpy as jnp
from jax.experimental import pallas as pl
from jax.experimental.pallas import tpu as pltpu


def get_gaussian_kernel1d(radius: int, sigma: float) -> np.ndarray:
    """Deterministic re-implementation of cv2.getGaussianKernel (1-D)."""
    if radius % 2 == 0:
        radius += 1
    if sigma <= 0:
        sigma = 0.3 * ((radius - 1) * 0.5 - 1.0) + 0.8
    x = np.arange(radius, dtype=np.float64) - (radius - 1) / 2.0
    g = np.exp(-(x ** 2) / (2.0 * sigma ** 2))
    g /= g.sum()
    return g.astype(np.float32)


def make_usm_sharp(radius: int = 5, sigma: float = 0, weight: float = 0.5,
                   threshold: float = 10.0, bc_tile: int | None = None):
    g1 = get_gaussian_kernel1d(radius, sigma)
    k = g1.shape[0]
    p = k // 2
    k2d = np.outer(g1, g1).astype(np.float32)          # for the reference
    gt = [float(v) for v in g1]                         # taps as Python consts

    def _sep_blur(arr, oh, ow):
        # arr: (T, oh + 2p, ow + 2p) f32.  Separable Gaussian: vertical pass
        # then horizontal pass, 2k multiply-adds per pixel.
        acc_v = gt[0] * arr[:, 0:oh, :]
        for di in range(1, k):
            acc_v = acc_v + gt[di] * arr[:, di:di + oh, :]
        acc = gt[0] * acc_v[:, :, 0:ow]
        for dj in range(1, k):
            acc = acc + gt[dj] * acc_v[:, :, dj:dj + ow]
        return acc

    def usm_kernel(xp2_ref, out_ref):
        xp2 = xp2_ref[...]                               # (T, h+4p, w+4p)
        _, H2, W2 = xp2.shape
        h, w = H2 - 4 * p, W2 - 4 * p
        he, we = h + 2 * p, w + 2 * p
        # Gaussian blur on the p-extended region [-p, h+p) x [-p, w+p).
        blur_e = _sep_blur(xp2, he, we)                  # (T, h+2p, w+2p)
        img_e = xp2[:, p:p + he, p:p + we]
        # Hard mask on the extended region (== reflect-padded interior mask).
        mask_e = (jnp.abs(img_e - blur_e) * 255.0 > float(threshold)
                  ).astype(jnp.float32)
        # Soft mask = Gaussian blur of the hard mask, interior only.
        soft = _sep_blur(mask_e, h, w)                   # (T, h, w)
        img_c = img_e[:, p:p + h, p:p + w]
        blur_c = blur_e[:, p:p + h, p:p + w]
        sharp = jnp.clip(img_c + float(weight) * (img_c - blur_c), 0.0, 1.0)
        out_ref[...] = soft * sharp + (1.0 - soft) * img_c

    def usm_sharp(img):
        b, c, h, w = img.shape
        assert h > 2 * p and w > 2 * p, "fused kernel needs h, w > 2*p for reflect pad"
        bc = b * c
        x = img.reshape(bc, h, w).astype(jnp.float32)
        # Single reflect pad by 2p (covers both filter2d calls of the module).
        xp2 = jnp.pad(x, ((0, 0), (2 * p, 2 * p), (2 * p, 2 * p)), mode="reflect")
        H2, W2 = h + 4 * p, w + 4 * p

        # Per-plane VMEM estimate: double-buffered input + working set
        # (blur_e / mask_e / soft) + double-buffered output, f32.
        per_plane = 4 * (2 * H2 * W2 + 3 * (h + 2 * p) * (w + 2 * p) + 2 * h * w)
        budget = 8 * 1024 * 1024
        if bc_tile is not None:
            t = bc_tile
        else:
            t = 1
            for cand in range(1, bc + 1):
                if bc % cand == 0 and cand * per_plane <= budget:
                    t = cand

        out = pl.pallas_call(
            usm_kernel,
            out_shape=jax.ShapeDtypeStruct((bc, h, w), jnp.float32),
            grid=(bc // t,),
            in_specs=[pl.BlockSpec((t, H2, W2), lambda i: (i, 0, 0))],
            out_specs=pl.BlockSpec((t, h, w), lambda i: (i, 0, 0)),
            compiler_params=pltpu.CompilerParams(
                dimension_semantics=("parallel",),
                vmem_limit_bytes=32 * 1024 * 1024),
        )(xp2)
        return out.reshape(b, c, h, w)

    return usm_sharp, k2d, p


def _numpy_reference(img, k2d, p, weight=0.5, threshold=10.0):
    """Direct float64 re-implementation of the PyTorch USMSharp.forward."""
    b, c, h, w = img.shape
    k = k2d.shape[0]
    x = img.reshape(b * c, h, w).astype(np.float64)

    def conv(planes):
        pp = np.pad(planes, ((0, 0), (p, p), (p, p)), mode="reflect")
        acc = np.zeros_like(planes)
        for di in range(k):
            for dj in range(k):
                acc += k2d[di, dj] * pp[:, di:di + h, dj:dj + w]
        return acc

    blur = conv(x)
    resid = x - blur
    mask = (np.abs(resid) * 255.0 > threshold).astype(np.float64)
    soft = conv(mask)
    sharp = np.clip(x + weight * resid, 0.0, 1.0)
    out = soft * sharp + (1.0 - soft) * x
    return out.reshape(b, c, h, w).astype(np.float32)


if __name__ == "__main__":
    key = jax.random.PRNGKey(0)
    img = jax.random.uniform(key, (2, 4, 16, 16), dtype=jnp.float32)

    # Module default radius=50 needs h, w > 100 for the fused 2p reflect pad;
    # the demo uses radius=5 so small 16x16 spatial shapes exercise the same
    # code path with a smaller deterministic Gaussian.
    usm_sharp, k2d, p = make_usm_sharp(radius=5, sigma=0)
    out = jax.jit(usm_sharp)(img)
    out = jax.block_until_ready(out)

    ref = _numpy_reference(np.asarray(img), k2d, p)
    np.testing.assert_allclose(np.asarray(out), ref, atol=5e-5, rtol=5e-5)

    print("KERNEL_OK")
</pallas_src>

<mosaic_0001>
module attributes {stable_mosaic.version = 11 : i64} {
  func.func @usm_kernel(%arg0: i32, %arg1: memref<8x24x24xf32, #tpu.memory_space<vmem>>, %arg2: memref<8x16x16xf32, #tpu.memory_space<vmem>>) attributes {dimension_semantics = [#tpu.dimension_semantics<parallel>], iteration_bounds = array<i64: 1>, scalar_prefetch = 0 : i64, scratch_operands = 0 : i64, tpu.core_type = #tpu.core_type<tc>, window_params = [{transform_indices = @transform_0, window_bounds = array<i64: 8, 24, 24>}, {transform_indices = @transform_1, window_bounds = array<i64: 8, 16, 16>}]} {
    %c0 = arith.constant 0 : index
    %c0_0 = arith.constant 0 : index
    %c0_1 = arith.constant 0 : index
    %0 = vector.load %arg1[%c0, %c0_0, %c0_1] : memref<8x24x24xf32, #tpu.memory_space<vmem>>, vector<8x24x24xf32>
    %1 = vector.extract_strided_slice %0 {offsets = [0, 0, 0], sizes = [8, 20, 24], strides = [1, 1, 1]} : vector<8x24x24xf32> to vector<8x20x24xf32>
    %cst = arith.constant 0.0707663745 : f32
    %2 = vector.broadcast %cst : f32 to vector<8x20x24xf32>
    %3 = arith.mulf %2, %1 : vector<8x20x24xf32>
    %4 = vector.extract_strided_slice %0 {offsets = [0, 1, 0], sizes = [8, 20, 24], strides = [1, 1, 1]} : vector<8x24x24xf32> to vector<8x20x24xf32>
    %cst_2 = arith.constant 0.244460404 : f32
    %5 = vector.broadcast %cst_2 : f32 to vector<8x20x24xf32>
    %6 = arith.mulf %5, %4 : vector<8x20x24xf32>
    %7 = arith.addf %3, %6 : vector<8x20x24xf32>
    %8 = vector.extract_strided_slice %0 {offsets = [0, 2, 0], sizes = [8, 20, 24], strides = [1, 1, 1]} : vector<8x24x24xf32> to vector<8x20x24xf32>
    %cst_3 = arith.constant 0.369546473 : f32
    %9 = vector.broadcast %cst_3 : f32 to vector<8x20x24xf32>
    %10 = arith.mulf %9, %8 : vector<8x20x24xf32>
    %11 = arith.addf %7, %10 : vector<8x20x24xf32>
    %12 = vector.extract_strided_slice %0 {offsets = [0, 3, 0], sizes = [8, 20, 24], strides = [1, 1, 1]} : vector<8x24x24xf32> to vector<8x20x24xf32>
    %cst_4 = arith.constant 0.244460404 : f32
    %13 = vector.broadcast %cst_4 : f32 to vector<8x20x24xf32>
    %14 = arith.mulf %13, %12 : vector<8x20x24xf32>
    %15 = arith.addf %11, %14 : vector<8x20x24xf32>
    %16 = vector.extract_strided_slice %0 {offsets = [0, 4, 0], sizes = [8, 20, 24], strides = [1, 1, 1]} : vector<8x24x24xf32> to vector<8x20x24xf32>
    %cst_5 = arith.constant 0.0707663745 : f32
    %17 = vector.broadcast %cst_5 : f32 to vector<8x20x24xf32>
    %18 = arith.mulf %17, %16 : vector<8x20x24xf32>
    %19 = arith.addf %15, %18 : vector<8x20x24xf32>
    %20 = vector.extract_strided_slice %19 {offsets = [0, 0, 0], sizes = [8, 20, 20], strides = [1, 1, 1]} : vector<8x20x24xf32> to vector<8x20x20xf32>
    %cst_6 = arith.constant 0.0707663745 : f32
    %21 = vector.broadcast %cst_6 : f32 to vector<8x20x20xf32>
    %22 = arith.mulf %21, %20 : vector<8x20x20xf32>
    %23 = vector.extract_strided_slice %19 {offsets = [0, 0, 1], sizes = [8, 20, 20], strides = [1, 1, 1]} : vector<8x20x24xf32> to vector<8x20x20xf32>
    %cst_7 = arith.constant 0.244460404 : f32
    %24 = vector.broadcast %cst_7 : f32 to vector<8x20x20xf32>
    %25 = arith.mulf %24, %23 : vector<8x20x20xf32>
    %26 = arith.addf %22, %25 : vector<8x20x20xf32>
    %27 = vector.extract_strided_slice %19 {offsets = [0, 0, 2], sizes = [8, 20, 20], strides = [1, 1, 1]} : vector<8x20x24xf32> to vector<8x20x20xf32>
    %cst_8 = arith.constant 0.369546473 : f32
    %28 = vector.broadcast %cst_8 : f32 to vector<8x20x20xf32>
    %29 = arith.mulf %28, %27 : vector<8x20x20xf32>
    %30 = arith.addf %26, %29 : vector<8x20x20xf32>
    %31 = vector.extract_strided_slice %19 {offsets = [0, 0, 3], sizes = [8, 20, 20], strides = [1, 1, 1]} : vector<8x20x24xf32> to vector<8x20x20xf32>
    %cst_9 = arith.constant 0.244460404 : f32
    %32 = vector.broadcast %cst_9 : f32 to vector<8x20x20xf32>
    %33 = arith.mulf %32, %31 : vector<8x20x20xf32>
    %34 = arith.addf %30, %33 : vector<8x20x20xf32>
    %35 = vector.extract_strided_slice %19 {offsets = [0, 0, 4], sizes = [8, 20, 20], strides = [1, 1, 1]} : vector<8x20x24xf32> to vector<8x20x20xf32>
    %cst_10 = arith.constant 0.0707663745 : f32
    %36 = vector.broadcast %cst_10 : f32 to vector<8x20x20xf32>
    %37 = arith.mulf %36, %35 : vector<8x20x20xf32>
    %38 = arith.addf %34, %37 : vector<8x20x20xf32>
    %39 = vector.extract_strided_slice %0 {offsets = [0, 2, 2], sizes = [8, 20, 20], strides = [1, 1, 1]} : vector<8x24x24xf32> to vector<8x20x20xf32>
    %40 = arith.subf %39, %38 : vector<8x20x20xf32>
    %41 = math.absf %40 : vector<8x20x20xf32>
    %cst_11 = arith.constant 2.550000e+02 : f32
    %42 = vector.broadcast %cst_11 : f32 to vector<8x20x20xf32>
    %43 = arith.mulf %41, %42 : vector<8x20x20xf32>
    %cst_12 = arith.constant 1.000000e+01 : f32
    %44 = vector.broadcast %cst_12 : f32 to vector<8x20x20xf32>
    %45 = arith.cmpf ogt, %43, %44 : vector<8x20x20xf32>
    %46 = arith.extui %45 : vector<8x20x20xi1> to vector<8x20x20xi32>
    %47 = arith.sitofp %46 : vector<8x20x20xi32> to vector<8x20x20xf32>
    %48 = vector.extract_strided_slice %47 {offsets = [0, 0, 0], sizes = [8, 16, 20], strides = [1, 1, 1]} : vector<8x20x20xf32> to vector<8x16x20xf32>
    %cst_13 = arith.constant 0.0707663745 : f32
    %49 = vector.broadcast %cst_13 : f32 to vector<8x16x20xf32>
    %50 = arith.mulf %49, %48 : vector<8x16x20xf32>
    %51 = vector.extract_strided_slice %47 {offsets = [0, 1, 0], sizes = [8, 16, 20], strides = [1, 1, 1]} : vector<8x20x20xf32> to vector<8x16x20xf32>
    %cst_14 = arith.constant 0.244460404 : f32
    %52 = vector.broadcast %cst_14 : f32 to vector<8x16x20xf32>
    %53 = arith.mulf %52, %51 : vector<8x16x20xf32>
    %54 = arith.addf %50, %53 : vector<8x16x20xf32>
    %55 = vector.extract_strided_slice %47 {offsets = [0, 2, 0], sizes = [8, 16, 20], strides = [1, 1, 1]} : vector<8x20x20xf32> to vector<8x16x20xf32>
    %cst_15 = arith.constant 0.369546473 : f32
    %56 = vector.broadcast %cst_15 : f32 to vector<8x16x20xf32>
    %57 = arith.mulf %56, %55 : vector<8x16x20xf32>
    %58 = arith.addf %54, %57 : vector<8x16x20xf32>
    %59 = vector.extract_strided_slice %47 {offsets = [0, 3, 0], sizes = [8, 16, 20], strides = [1, 1, 1]} : vector<8x20x20xf32> to vector<8x16x20xf32>
    %cst_16 = arith.constant 0.244460404 : f32
    %60 = vector.broadcast %cst_16 : f32 to vector<8x16x20xf32>
    %61 = arith.mulf %60, %59 : vector<8x16x20xf32>
    %62 = arith.addf %58, %61 : vector<8x16x20xf32>
    %63 = vector.extract_strided_slice %47 {offsets = [0, 4, 0], sizes = [8, 16, 20], strides = [1, 1, 1]} : vector<8x20x20xf32> to vector<8x16x20xf32>
    %cst_17 = arith.constant 0.0707663745 : f32
    %64 = vector.broadcast %cst_17 : f32 to vector<8x16x20xf32>
    %65 = arith.mulf %64, %63 : vector<8x16x20xf32>
    %66 = arith.addf %62, %65 : vector<8x16x20xf32>
    %67 = vector.extract_strided_slice %66 {offsets = [0, 0, 0], sizes = [8, 16, 16], strides = [1, 1, 1]} : vector<8x16x20xf32> to vector<8x16x16xf32>
    %cst_18 = arith.constant 0.0707663745 : f32
    %68 = vector.broadcast %cst_18 : f32 to vector<8x16x16xf32>
    %69 = arith.mulf %68, %67 : vector<8x16x16xf32>
    %70 = vector.extract_strided_slice %66 {offsets = [0, 0, 1], sizes = [8, 16, 16], strides = [1, 1, 1]} : vector<8x16x20xf32> to vector<8x16x16xf32>
    %cst_19 = arith.constant 0.244460404 : f32
    %71 = vector.broadcast %cst_19 : f32 to vector<8x16x16xf32>
    %72 = arith.mulf %71, %70 : vector<8x16x16xf32>
    %73 = arith.addf %69, %72 : vector<8x16x16xf32>
    %74 = vector.extract_strided_slice %66 {offsets = [0, 0, 2], sizes = [8, 16, 16], strides = [1, 1, 1]} : vector<8x16x20xf32> to vector<8x16x16xf32>
    %cst_20 = arith.constant 0.369546473 : f32
    %75 = vector.broadcast %cst_20 : f32 to vector<8x16x16xf32>
    %76 = arith.mulf %75, %74 : vector<8x16x16xf32>
    %77 = arith.addf %73, %76 : vector<8x16x16xf32>
    %78 = vector.extract_strided_slice %66 {offsets = [0, 0, 3], sizes = [8, 16, 16], strides = [1, 1, 1]} : vector<8x16x20xf32> to vector<8x16x16xf32>
    %cst_21 = arith.constant 0.244460404 : f32
    %79 = vector.broadcast %cst_21 : f32 to vector<8x16x16xf32>
    %80 = arith.mulf %79, %78 : vector<8x16x16xf32>
    %81 = arith.addf %77, %80 : vector<8x16x16xf32>
    %82 = vector.extract_strided_slice %66 {offsets = [0, 0, 4], sizes = [8, 16, 16], strides = [1, 1, 1]} : vector<8x16x20xf32> to vector<8x16x16xf32>
    %cst_22 = arith.constant 0.0707663745 : f32
    %83 = vector.broadcast %cst_22 : f32 to vector<8x16x16xf32>
    %84 = arith.mulf %83, %82 : vector<8x16x16xf32>
    %85 = arith.addf %81, %84 : vector<8x16x16xf32>
    %86 = vector.extract_strided_slice %39 {offsets = [0, 2, 2], sizes = [8, 16, 16], strides = [1, 1, 1]} : vector<8x20x20xf32> to vector<8x16x16xf32>
    %87 = vector.extract_strided_slice %38 {offsets = [0, 2, 2], sizes = [8, 16, 16], strides = [1, 1, 1]} : vector<8x20x20xf32> to vector<8x16x16xf32>
    %88 = arith.subf %86, %87 : vector<8x16x16xf32>
    %cst_23 = arith.constant 5.000000e-01 : f32
    %89 = vector.broadcast %cst_23 : f32 to vector<8x16x16xf32>
    %90 = arith.mulf %89, %88 : vector<8x16x16xf32>
    %91 = arith.addf %86, %90 : vector<8x16x16xf32>
    %cst_24 = arith.constant 0.000000e+00 : f32
    %cst_25 = arith.constant 1.000000e+00 : f32
    %92 = vector.broadcast %cst_24 : f32 to vector<8x16x16xf32>
    %93 = arith.maximumf %92, %91 : vector<8x16x16xf32>
    %94 = vector.broadcast %cst_25 : f32 to vector<8x16x16xf32>
    %95 = arith.minimumf %94, %93 : vector<8x16x16xf32>
    %96 = arith.mulf %85, %95 : vector<8x16x16xf32>
    %cst_26 = arith.constant 1.000000e+00 : f32
    %97 = vector.broadcast %cst_26 : f32 to vector<8x16x16xf32>
    %98 = arith.subf %97, %85 : vector<8x16x16xf32>
    %99 = arith.mulf %98, %86 : vector<8x16x16xf32>
    %100 = arith.addf %96, %99 : vector<8x16x16xf32>
    %c0_27 = arith.constant 0 : index
    %c0_28 = arith.constant 0 : index
    %c0_29 = arith.constant 0 : index
    %101 = vector.load %arg2[%c0_27, %c0_28, %c0_29] : memref<8x16x16xf32, #tpu.memory_space<vmem>>, vector<8x16x16xf32>
    tpu.vector_store %arg2[%c0_27, %c0_28, %c0_29], %100 {strides = array<i32>} : memref<8x16x16xf32, #tpu.memory_space<vmem>>, vector<8x16x16xf32>,
    return
  }
  func.func @transform_0(%arg0: i32) -> (i32, i32, i32) {
    %c0_i32 = arith.constant 0 : i32
    %c0_i32_0 = arith.constant 0 : i32
    %c0_i32_1 = arith.constant 0 : i32
    return %arg0, %c0_i32, %c0_i32_0 : i32, i32, i32
  }
  func.func @transform_1(%arg0: i32) -> (i32, i32, i32) {
    %c0_i32 = arith.constant 0 : i32
    %c0_i32_0 = arith.constant 0 : i32
    %c0_i32_1 = arith.constant 0 : i32
    return %arg0, %c0_i32, %c0_i32_0 : i32, i32, i32
  }
}

</mosaic_0001>

<llo_original>
// kernel: usm_sharp.1
$region0: #{usm_sharp.1}
  #allocation0 [shape = 'u32[]', space=smem, size = 0x4, offset = 0x4, fixed_abs, tag = 'smem constant byte address 0x4 - core index']
  #allocation1 [shape = 'u32[144,128]{1,0:T(1,128)}', space=vmem, size = 0x12000, scoped, tag = 'internal scratch']
  %s0 = inlined_call_operand.vmem [shape: f32[8,24,24], index: 0, kind: input, shape index: {}]
  %s1 = inlined_call_operand.hbm [shape: f32[8,16,16], index: 1, kind: output, shape index: {}]
  %s2 = sld [smem:[#allocation0]]
  $region14: #{usm_sharp.1} parent=0
    _
  %s4 = ssub.s32 1, %s2
  %s5 = scalar_select 0, %s4, %s2
  $region1: #{usm_sharp.1} parent=0
    #allocation2 [shape = 'u8[65536]{0}', space=vmem, size = 0x10000, scoped, tag = 'output window, operand 0, single buffered']
    #allocation3 [shape = 's32[1]{0}', space=sflag, size = 0x4, scoped, tag = 'scoped memory for usm_sharp.1']
    %6 = vsyncpa [#allocation3], 0
    // Predicated region
    $region2: #{usm_sharp.1} parent=1 // pred_check
      _
    $region3: #{usm_sharp.1} parent=1 // pred_check_branch
      %8 = sbr.rel (0) target = $region5
    $region4: #{usm_sharp.1} parent=1 // pred_region
      _
    $region5: #{usm_sharp.1} parent=1 // pred_fallthru
      _
    %v9 = vld [vmem:[%s0] sm:$0xff]
    %v10 = vld [vmem:[%s0 + $0x8] sm:$0xff]
    %v11 = vld [vmem:[%s0 + $0x10] sm:$0xff]
    %v12 = vld [vmem:[%s0 + $0x18] sm:$0xff]
    %v13 = vld [vmem:[%s0 + $0x20] sm:$0xff]
    %v14 = vld [vmem:[%s0 + $0x28] sm:$0xff]
    %v15 = vld [vmem:[%s0 + $0x30] sm:$0xff]
    %v16 = vld [vmem:[%s0 + $0x38] sm:$0xff]
    %v17 = vld [vmem:[%s0 + $0x40] sm:$0xff]
    %v18 = vld [vmem:[%s0 + $0x48] sm:$0xff]
    %v19 = vld [vmem:[%s0 + $0x50] sm:$0xff]
    %v20 = vld [vmem:[%s0 + $0x58] sm:$0xff]
    %v21 = vld [vmem:[%s0 + $0x60] sm:$0xff]
    %v22 = vld [vmem:[%s0 + $0x68] sm:$0xff]
    %v23 = vld [vmem:[%s0 + $0x70] sm:$0xff]
    %v24 = vld [vmem:[%s0 + $0x78] sm:$0xff]
    %v25 = vld [vmem:[%s0 + $0x80] sm:$0xff]
    %v26 = vld [vmem:[%s0 + $0x88] sm:$0xff]
    %v27 = vld [vmem:[%s0 + $0x90] sm:$0xff]
    %v28 = vld [vmem:[%s0 + $0x98] sm:$0xff]
    %v29 = vld [vmem:[%s0 + $0xa0] sm:$0xff]
    %v30 = vld [vmem:[%s0 + $0xa8] sm:$0xff]
    %v31 = vld [vmem:[%s0 + $0xb0] sm:$0xff]
    %v32 = vld [vmem:[%s0 + $0xb8] sm:$0xff]
    %v33 = vmul.f32 %v9, 0.070766374
    %v34 = vmul.f32 %v10, 0.070766374
    %v35 = vmul.f32 %v11, 0.070766374
    %v36 = vmul.f32 %v12, 0.070766374
    %v37 = vmul.f32 %v13, 0.070766374
    %v38 = vmul.f32 %v14, 0.070766374
    %v39 = vmul.f32 %v15, 0.070766374
    %v40 = vmul.f32 %v16, 0.070766374
    %v41 = vmul.f32 %v17, 0.070766374
    %v42 = vmul.f32 %v18, 0.070766374
    %v43 = vmul.f32 %v19, 0.070766374
    %v44 = vmul.f32 %v20, 0.070766374
    %v45 = vmul.f32 %v21, 0.070766374
    %v46 = vmul.f32 %v22, 0.070766374
    %v47 = vmul.f32 %v23, 0.070766374
    %v48 = vmul.f32 %v24, 0.070766374
    %v49 = vmul.f32 %v25, 0.070766374
    %v50 = vmul.f32 %v26, 0.070766374
    %v51 = vmul.f32 %v27, 0.070766374
    %v52 = vmul.f32 %v28, 0.070766374
    %v53 = vmul.f32 %v29, 0.070766374
    %v54 = vmul.f32 %v30, 0.070766374
    %v55 = vmul.f32 %v31, 0.070766374
    %v56 = vmul.f32 %v32, 0.070766374
    %v57 = vmul.f32 %v9, 0.2444604
    %v58 = vmul.f32 %v10, 0.2444604
    %v59 = vmul.f32 %v11, 0.2444604
    %v60 = vmul.f32 %v12, 0.2444604
    %v61 = vmul.f32 %v13, 0.2444604
    %v62 = vmul.f32 %v14, 0.2444604
    %v63 = vmul.f32 %v15, 0.2444604
    %v64 = vmul.f32 %v16, 0.2444604
    %v65 = vmul.f32 %v17, 0.2444604
    %v66 = vmul.f32 %v18, 0.2444604
    %v67 = vmul.f32 %v19, 0.2444604
    %v68 = vmul.f32 %v20, 0.2444604
    %v69 = vmul.f32 %v21, 0.2444604
    %v70 = vmul.f32 %v22, 0.2444604
    %v71 = vmul.f32 %v23, 0.2444604
    %v72 = vmul.f32 %v24, 0.2444604
    %v73 = vmul.f32 %v25, 0.2444604
    %v74 = vmul.f32 %v26, 0.2444604
    %v75 = vmul.f32 %v27, 0.2444604
    %v76 = vmul.f32 %v28, 0.2444604
    %v77 = vmul.f32 %v29, 0.2444604
    %v78 = vmul.f32 %v30, 0.2444604
    %v79 = vmul.f32 %v31, 0.2444604
    %v80 = vmul.f32 %v32, 0.2444604
    %vm105 = vcmask 1046528
    %v106 = vrot.slane %v57, 1
    %v107 = vrot.slane %v58, 1
    %v108 = vsel %vm105, %v106, %v107
    %v109 = vrot.slane %v59, 1
    %v110 = vsel %vm105, %v107, %v109
    %v111 = vrot.slane %v60, 1
    %v112 = vrot.slane %v61, 1
    %v113 = vsel %vm105, %v111, %v112
    %v114 = vrot.slane %v62, 1
    %v115 = vsel %vm105, %v112, %v114
    %v116 = vrot.slane %v63, 1
    %v117 = vrot.slane %v64, 1
    %v118 = vsel %vm105, %v116, %v117
    %v119 = vrot.slane %v65, 1
    %v120 = vsel %vm105, %v117, %v119
    %v121 = vrot.slane %v66, 1
    %v122 = vrot.slane %v67, 1
    %v123 = vsel %vm105, %v121, %v122
    %v124 = vrot.slane %v68, 1
    %v125 = vsel %vm105, %v122, %v124
    %v126 = vrot.slane %v69, 1
    %v127 = vrot.slane %v70, 1
    %v128 = vsel %vm105, %v126, %v127
    %v129 = vrot.slane %v71, 1
    %v130 = vsel %vm105, %v127, %v129
    %v131 = vrot.slane %v72, 1
    %v132 = vrot.slane %v73, 1
    %v133 = vsel %vm105, %v131, %v132
    %v134 = vrot.slane %v74, 1
    %v135 = vsel %vm105, %v132, %v134
    %v136 = vrot.slane %v75, 1
    %v137 = vrot.slane %v76, 1
    %v138 = vsel %vm105, %v136, %v137
    %v139 = vrot.slane %v77, 1
    %v140 = vsel %vm105, %v137, %v139
    %v141 = vrot.slane %v78, 1
    %v142 = vrot.slane %v79, 1
    %v143 = vsel %vm105, %v141, %v142
    %v144 = vrot.slane %v80, 1
    %v145 = vsel %vm105, %v142, %v144
    %v170 = vadd.f32 %v33, %v108
    %v171 = vadd.f32 %v34, %v110
    %v172 = vadd.f32 %v35, %v109
    %v173 = vadd.f32 %v36, %v113
    %v174 = vadd.f32 %v37, %v115
    %v175 = vadd.f32 %v38, %v114
    %v176 = vadd.f32 %v39, %v118
    %v177 = vadd.f32 %v40, %v120
    %v178 = vadd.f32 %v41, %v119
    %v179 = vadd.f32 %v42, %v123
    %v180 = vadd.f32 %v43, %v125
    %v181 = vadd.f32 %v44, %v124
    %v182 = vadd.f32 %v45, %v128
    %v183 = vadd.f32 %v46, %v130
    %v184 = vadd.f32 %v47, %v129
    %v185 = vadd.f32 %v48, %v133
    %v186 = vadd.f32 %v49, %v135
    %v187 = vadd.f32 %v50, %v134
    %v188 = vadd.f32 %v51, %v138
    %v189 = vadd.f32 %v52, %v140
    %v190 = vadd.f32 %v53, %v139
    %v191 = vadd.f32 %v54, %v143
    %v192 = vadd.f32 %v55, %v145
    %v193 = vadd.f32 %v56, %v144
    %v194 = vmul.f32 %v9, 0.36954647
    %v195 = vmul.f32 %v10, 0.36954647
    %v196 = vmul.f32 %v11, 0.36954647
    %v197 = vmul.f32 %v12, 0.36954647
    %v198 = vmul.f32 %v13, 0.36954647
    %v199 = vmul.f32 %v14, 0.36954647
    %v200 = vmul.f32 %v15, 0.36954647
    %v201 = vmul.f32 %v16, 0.36954647
    %v202 = vmul.f32 %v17, 0.36954647
    %v203 = vmul.f32 %v18, 0.36954647
    %v204 = vmul.f32 %v19, 0.36954647
    %v205 = vmul.f32 %v20, 0.36954647
    %v206 = vmul.f32 %v21, 0.36954647
    %v207 = vmul.f32 %v22, 0.36954647
    %v208 = vmul.f32 %v23, 0.36954647
    %v209 = vmul.f32 %v24, 0.36954647
    %v210 = vmul.f32 %v25, 0.36954647
    %v211 = vmul.f32 %v26, 0.36954647
    %v212 = vmul.f32 %v27, 0.36954647
    %v213 = vmul.f32 %v28, 0.36954647
    %v214 = vmul.f32 %v29, 0.36954647
    %v215 = vmul.f32 %v30, 0.36954647
    %v216 = vmul.f32 %v31, 0.36954647
    %v217 = vmul.f32 %v32, 0.36954647
    %vm242 = vcmask 1045504
    %v243 = vrot.slane %v194, 2
    %v244 = vrot.slane %v195, 2
    %v245 = vsel %vm242, %v243, %v244
    %v246 = vrot.slane %v196, 2
    %v247 = vsel %vm242, %v244, %v246
    %v248 = vrot.slane %v197, 2
    %v249 = vrot.slane %v198, 2
    %v250 = vsel %vm242, %v248, %v249
    %v251 = vrot.slane %v199, 2
    %v252 = vsel %vm242, %v249, %v251
    %v253 = vrot.slane %v200, 2
    %v254 = vrot.slane %v201, 2
    %v255 = vsel %vm242, %v253, %v254
    %v256 = vrot.slane %v202, 2
    %v257 = vsel %vm242, %v254, %v256
    %v258 = vrot.slane %v203, 2
    %v259 = vrot.slane %v204, 2
    %v260 = vsel %vm242, %v258, %v259
    %v261 = vrot.slane %v205, 2
    %v262 = vsel %vm242, %v259, %v261
    %v263 = vrot.slane %v206, 2
    %v264 = vrot.slane %v207, 2
    %v265 = vsel %vm242, %v263, %v264
    %v266 = vrot.slane %v208, 2
    %v267 = vsel %vm242, %v264, %v266
    %v268 = vrot.slane %v209, 2
    %v269 = vrot.slane %v210, 2
    %v270 = vsel %vm242, %v268, %v269
    %v271 = vrot.slane %v211, 2
    %v272 = vsel %vm242, %v269, %v271
    %v273 = vrot.slane %v212, 2
    %v274 = vrot.slane %v213, 2
    %v275 = vsel %vm242, %v273, %v274
    %v276 = vrot.slane %v214, 2
    %v277 = vsel %vm242, %v274, %v276
    %v278 = vrot.slane %v215, 2
    %v279 = vrot.slane %v216, 2
    %v280 = vsel %vm242, %v278, %v279
    %v281 = vrot.slane %v217, 2
    %v282 = vsel %vm242, %v279, %v281
    %v307 = vadd.f32 %v170, %v245
    %v308 = vadd.f32 %v171, %v247
    %v309 = vadd.f32 %v172, %v246
    %v310 = vadd.f32 %v173, %v250
    %v311 = vadd.f32 %v174, %v252
    %v312 = vadd.f32 %v175, %v251
    %v313 = vadd.f32 %v176, %v255
    %v314 = vadd.f32 %v177, %v257
    %v315 = vadd.f32 %v178, %v256
    %v316 = vadd.f32 %v179, %v260
    %v317 = vadd.f32 %v180, %v262
    %v318 = vadd.f32 %v181, %v261
    %v319 = vadd.f32 %v182, %v265
    %v320 = vadd.f32 %v183, %v267
    %v321 = vadd.f32 %v184, %v266
    %v322 = vadd.f32 %v185, %v270
    %v323 = vadd.f32 %v186, %v272
    %v324 = vadd.f32 %v187, %v271
    %v325 = vadd.f32 %v188, %v275
    %v326 = vadd.f32 %v189, %v277
    %v327 = vadd.f32 %v190, %v276
    %v328 = vadd.f32 %v191, %v280
    %v329 = vadd.f32 %v192, %v282
    %v330 = vadd.f32 %v193, %v281
    %vm331 = vcmask 1044480
    %v332 = vrot.slane %v57, 3
    %v333 = vrot.slane %v58, 3
    %v334 = vsel %vm331, %v332, %v333
    %v335 = vrot.slane %v59, 3
    %v336 = vsel %vm331, %v333, %v335
    %v337 = vrot.slane %v60, 3
    %v338 = vrot.slane %v61, 3
    %v339 = vsel %vm331, %v337, %v338
    %v340 = vrot.slane %v62, 3
    %v341 = vsel %vm331, %v338, %v340
    %v342 = vrot.slane %v63, 3
    %v343 = vrot.slane %v64, 3
    %v344 = vsel %vm331, %v342, %v343
    %v345 = vrot.slane %v65, 3
    %v346 = vsel %vm331, %v343, %v345
    %v347 = vrot.slane %v66, 3
    %v348 = vrot.slane %v67, 3
    %v349 = vsel %vm331, %v347, %v348
    %v350 = vrot.slane %v68, 3
    %v351 = vsel %vm331, %v348, %v350
    %v352 = vrot.slane %v69, 3
    %v353 = vrot.slane %v70, 3
    %v354 = vsel %vm331, %v352, %v353
    %v355 = vrot.slane %v71, 3
    %v356 = vsel %vm331, %v353, %v355
    %v357 = vrot.slane %v72, 3
    %v358 = vrot.slane %v73, 3
    %v359 = vsel %vm331, %v357, %v358
    %v360 = vrot.slane %v74, 3
    %v361 = vsel %vm331, %v358, %v360
    %v362 = vrot.slane %v75, 3
    %v363 = vrot.slane %v76, 3
    %v364 = vsel %vm331, %v362, %v363
    %v365 = vrot.slane %v77, 3
    %v366 = vsel %vm331, %v363, %v365
    %v367 = vrot.slane %v78, 3
    %v368 = vrot.slane %v79, 3
    %v369 = vsel %vm331, %v367, %v368
    %v370 = vrot.slane %v80, 3
    %v371 = vsel %vm331, %v368, %v370
    %v396 = vadd.f32 %v307, %v334
    %v397 = vadd.f32 %v308, %v336
    %v398 = vadd.f32 %v309, %v335
    %v399 = vadd.f32 %v310, %v339
    %v400 = vadd.f32 %v311, %v341
    %v401 = vadd.f32 %v312, %v340
    %v402 = vadd.f32 %v313, %v344
    %v403 = vadd.f32 %v314, %v346
    %v404 = vadd.f32 %v315, %v345
    %v405 = vadd.f32 %v316, %v349
    %v406 = vadd.f32 %v317, %v351
    %v407 = vadd.f32 %v318, %v350
    %v408 = vadd.f32 %v319, %v354
    %v409 = vadd.f32 %v320, %v356
    %v410 = vadd.f32 %v321, %v355
    %v411 = vadd.f32 %v322, %v359
    %v412 = vadd.f32 %v323, %v361
    %v413 = vadd.f32 %v324, %v360
    %v414 = vadd.f32 %v325, %v364
    %v415 = vadd.f32 %v326, %v366
    %v416 = vadd.f32 %v327, %v365
    %v417 = vadd.f32 %v328, %v369
    %v418 = vadd.f32 %v329, %v371
    %v419 = vadd.f32 %v330, %v370
    %vm444 = vcmask 1043456
    %v445 = vrot.slane %v33, 4
    %v446 = vrot.slane %v34, 4
    %v447 = vsel %vm444, %v445, %v446
    %v448 = vrot.slane %v35, 4
    %v449 = vsel %vm444, %v446, %v448
    %v450 = vrot.slane %v36, 4
    %v451 = vrot.slane %v37, 4
    %v452 = vsel %vm444, %v450, %v451
    %v453 = vrot.slane %v38, 4
    %v454 = vsel %vm444, %v451, %v453
    %v455 = vrot.slane %v39, 4
    %v456 = vrot.slane %v40, 4
    %v457 = vsel %vm444, %v455, %v456
    %v458 = vrot.slane %v41, 4
    %v459 = vsel %vm444, %v456, %v458
    %v460 = vrot.slane %v42, 4
    %v461 = vrot.slane %v43, 4
    %v462 = vsel %vm444, %v460, %v461
    %v463 = vrot.slane %v44, 4
    %v464 = vsel %vm444, %v461, %v463
    %v465 = vrot.slane %v45, 4
    %v466 = vrot.slane %v46, 4
    %v467 = vsel %vm444, %v465, %v466
    %v468 = vrot.slane %v47, 4
    %v469 = vsel %vm444, %v466, %v468
    %v470 = vrot.slane %v48, 4
    %v471 = vrot.slane %v49, 4
    %v472 = vsel %vm444, %v470, %v471
    %v473 = vrot.slane %v50, 4
    %v474 = vsel %vm444, %v471, %v473
    %v475 = vrot.slane %v51, 4
    %v476 = vrot.slane %v52, 4
    %v477 = vsel %vm444, %v475, %v476
    %v478 = vrot.slane %v53, 4
    %v479 = vsel %vm444, %v476, %v478
    %v480 = vrot.slane %v54, 4
    %v481 = vrot.slane %v55, 4
    %v482 = vsel %vm444, %v480, %v481
    %v483 = vrot.slane %v56, 4
    %v484 = vsel %vm444, %v481, %v483
    %v509 = vadd.f32 %v396, %v447
    %v510 = vadd.f32 %v397, %v449
    %v511 = vadd.f32 %v398, %v448
    %v512 = vadd.f32 %v399, %v452
    %v513 = vadd.f32 %v400, %v454
    %v514 = vadd.f32 %v401, %v453
    %v515 = vadd.f32 %v402, %v457
    %v516 = vadd.f32 %v403, %v459
    %v517 = vadd.f32 %v404, %v458
    %v518 = vadd.f32 %v405, %v462
    %v519 = vadd.f32 %v406, %v464
    %v520 = vadd.f32 %v407, %v463
    %v521 = vadd.f32 %v408, %v467
    %v522 = vadd.f32 %v409, %v469
    %v523 = vadd.f32 %v410, %v468
    %v524 = vadd.f32 %v411, %v472
    %v525 = vadd.f32 %v412, %v474
    %v526 = vadd.f32 %v413, %v473
    %v527 = vadd.f32 %v414, %v477
    %v528 = vadd.f32 %v415, %v479
    %v529 = vadd.f32 %v416, %v478
    %v530 = vadd.f32 %v417, %v482
    %v531 = vadd.f32 %v418, %v484
    %v532 = vadd.f32 %v419, %v483
    %v533 = vmul.f32 %v509, 0.070766374
    %v534 = vmul.f32 %v510, 0.070766374
    %v535 = vmul.f32 %v511, 0.070766374
    %v536 = vmul.f32 %v512, 0.070766374
    %v537 = vmul.f32 %v513, 0.070766374
    %v538 = vmul.f32 %v514, 0.070766374
    %v539 = vmul.f32 %v515, 0.070766374
    %v540 = vmul.f32 %v516, 0.070766374
    %v541 = vmul.f32 %v517, 0.070766374
    %v542 = vmul.f32 %v518, 0.070766374
    %v543 = vmul.f32 %v519, 0.070766374
    %v544 = vmul.f32 %v520, 0.070766374
    %v545 = vmul.f32 %v521, 0.070766374
    %v546 = vmul.f32 %v522, 0.070766374
    %v547 = vmul.f32 %v523, 0.070766374
    %v548 = vmul.f32 %v524, 0.070766374
    %v549 = vmul.f32 %v525, 0.070766374
    %v550 = vmul.f32 %v526, 0.070766374
    %v551 = vmul.f32 %v527, 0.070766374
    %v552 = vmul.f32 %v528, 0.070766374
    %v553 = vmul.f32 %v529, 0.070766374
    %v554 = vmul.f32 %v530, 0.070766374
    %v555 = vmul.f32 %v531, 0.070766374
    %v556 = vmul.f32 %v532, 0.070766374
    %v557 = vmul.f32 %v509, 0.2444604
    %v558 = vmul.f32 %v510, 0.2444604
    %v559 = vmul.f32 %v511, 0.2444604
    %v560 = vmul.f32 %v512, 0.2444604
    %v561 = vmul.f32 %v513, 0.2444604
    %v562 = vmul.f32 %v514, 0.2444604
    %v563 = vmul.f32 %v515, 0.2444604
    %v564 = vmul.f32 %v516, 0.2444604
    %v565 = vmul.f32 %v517, 0.2444604
    %v566 = vmul.f32 %v518, 0.2444604
    %v567 = vmul.f32 %v519, 0.2444604
    %v568 = vmul.f32 %v520, 0.2444604
    %v569 = vmul.f32 %v521, 0.2444604
    %v570 = vmul.f32 %v522, 0.2444604
    %v571 = vmul.f32 %v523, 0.2444604
    %v572 = vmul.f32 %v524, 0.2444604
    %v573 = vmul.f32 %v525, 0.2444604
    %v574 = vmul.f32 %v526, 0.2444604
    %v575 = vmul.f32 %v527, 0.2444604
    %v576 = vmul.f32 %v528, 0.2444604
    %v577 = vmul.f32 %v529, 0.2444604
    %v578 = vmul.f32 %v530, 0.2444604
    %v579 = vmul.f32 %v531, 0.2444604
    %v580 = vmul.f32 %v532, 0.2444604
    %605 = vrot.lane.b32.xlu0 %v557, 127
    %v606 = vpop.permute.xlu0 %605
    %607 = vrot.lane.b32.xlu0 %v558, 127
    %v608 = vpop.permute.xlu0 %607
    %609 = vrot.lane.b32.xlu0 %v559, 127
    %v610 = vpop.permute.xlu0 %609
    %611 = vrot.lane.b32.xlu0 %v560, 127
    %v612 = vpop.permute.xlu0 %611
    %613 = vrot.lane.b32.xlu0 %v561, 127
    %v614 = vpop.permute.xlu0 %613
    %615 = vrot.lane.b32.xlu0 %v562, 127
    %v616 = vpop.permute.xlu0 %615
    %617 = vrot.lane.b32.xlu0 %v563, 127
    %v618 = vpop.permute.xlu0 %617
    %619 = vrot.lane.b32.xlu0 %v564, 127
    %v620 = vpop.permute.xlu0 %619
    %621 = vrot.lane.b32.xlu0 %v565, 127
    %v622 = vpop.permute.xlu0 %621
    %623 = vrot.lane.b32.xlu0 %v566, 127
    %v624 = vpop.permute.xlu0 %623
    %625 = vrot.lane.b32.xlu0 %v567, 127
    %v626 = vpop.permute.xlu0 %625
    %627 = vrot.lane.b32.xlu0 %v568, 127
    %v628 = vpop.permute.xlu0 %627
    %629 = vrot.lane.b32.xlu0 %v569, 127
    %v630 = vpop.permute.xlu0 %629
    %631 = vrot.lane.b32.xlu0 %v570, 127
    %v632 = vpop.permute.xlu0 %631
    %633 = vrot.lane.b32.xlu0 %v571, 127
    %v634 = vpop.permute.xlu0 %633
    %635 = vrot.lane.b32.xlu0 %v572, 127
    %v636 = vpop.permute.xlu0 %635
    %637 = vrot.lane.b32.xlu0 %v573, 127
    %v638 = vpop.permute.xlu0 %637
    %639 = vrot.lane.b32.xlu0 %v574, 127
    %v640 = vpop.permute.xlu0 %639
    %641 = vrot.lane.b32.xlu0 %v575, 127
    %v642 = vpop.permute.xlu0 %641
    %643 = vrot.lane.b32.xlu0 %v576, 127
    %v644 = vpop.permute.xlu0 %643
    %645 = vrot.lane.b32.xlu0 %v577, 127
    %v646 = vpop.permute.xlu0 %645
    %647 = vrot.lane.b32.xlu0 %v578, 127
    %v648 = vpop.permute.xlu0 %647
    %649 = vrot.lane.b32.xlu0 %v579, 127
    %v650 = vpop.permute.xlu0 %649
    %651 = vrot.lane.b32.xlu0 %v580, 127
    %v652 = vpop.permute.xlu0 %651
    %v677 = vadd.f32 %v533, %v606
    %v678 = vadd.f32 %v534, %v608
    %v679 = vadd.f32 %v535, %v610
    %v680 = vadd.f32 %v536, %v612
    %v681 = vadd.f32 %v537, %v614
    %v682 = vadd.f32 %v538, %v616
    %v683 = vadd.f32 %v539, %v618
    %v684 = vadd.f32 %v540, %v620
    %v685 = vadd.f32 %v541, %v622
    %v686 = vadd.f32 %v542, %v624
    %v687 = vadd.f32 %v543, %v626
    %v688 = vadd.f32 %v544, %v628
    %v689 = vadd.f32 %v545, %v630
    %v690 = vadd.f32 %v546, %v632
    %v691 = vadd.f32 %v547, %v634
    %v692 = vadd.f32 %v548, %v636
    %v693 = vadd.f32 %v549, %v638
    %v694 = vadd.f32 %v550, %v640
    %v695 = vadd.f32 %v551, %v642
    %v696 = vadd.f32 %v552, %v644
    %v697 = vadd.f32 %v553, %v646
    %v698 = vadd.f32 %v554, %v648
    %v699 = vadd.f32 %v555, %v650
    %v700 = vadd.f32 %v556, %v652
    %v701 = vmul.f32 %v509, 0.36954647
    %v702 = vmul.f32 %v510, 0.36954647
    %v703 = vmul.f32 %v511, 0.36954647
    %v704 = vmul.f32 %v512, 0.36954647
    %v705 = vmul.f32 %v513, 0.36954647
    %v706 = vmul.f32 %v514, 0.36954647
    %v707 = vmul.f32 %v515, 0.36954647
    %v708 = vmul.f32 %v516, 0.36954647
    %v709 = vmul.f32 %v517, 0.36954647
    %v710 = vmul.f32 %v518, 0.36954647
    %v711 = vmul.f32 %v519, 0.36954647
    %v712 = vmul.f32 %v520, 0.36954647
    %v713 = vmul.f32 %v521, 0.36954647
    %v714 = vmul.f32 %v522, 0.36954647
    %v715 = vmul.f32 %v523, 0.36954647
    %v716 = vmul.f32 %v524, 0.36954647
    %v717 = vmul.f32 %v525, 0.36954647
    %v718 = vmul.f32 %v526, 0.36954647
    %v719 = vmul.f32 %v527, 0.36954647
    %v720 = vmul.f32 %v528, 0.36954647
    %v721 = vmul.f32 %v529, 0.36954647
    %v722 = vmul.f32 %v530, 0.36954647
    %v723 = vmul.f32 %v531, 0.36954647
    %v724 = vmul.f32 %v532, 0.36954647
    %749 = vrot.lane.b32.xlu0 %v701, 126
    %v750 = vpop.permute.xlu0 %749
    %751 = vrot.lane.b32.xlu0 %v702, 126
    %v752 = vpop.permute.xlu0 %751
    %753 = vrot.lane.b32.xlu0 %v703, 126
    %v754 = vpop.permute.xlu0 %753
    %755 = vrot.lane.b32.xlu0 %v704, 126
    %v756 = vpop.permute.xlu0 %755
    %757 = vrot.lane.b32.xlu0 %v705, 126
    %v758 = vpop.permute.xlu0 %757
    %759 = vrot.lane.b32.xlu0 %v706, 126
    %v760 = vpop.permute.xlu0 %759
    %761 = vrot.lane.b32.xlu0 %v707, 126
    %v762 = vpop.permute.xlu0 %761
    %763 = vrot.lane.b32.xlu0 %v708, 126
    %v764 = vpop.permute.xlu0 %763
    %765 = vrot.lane.b32.xlu0 %v709, 126
    %v766 = vpop.permute.xlu0 %765
    %767 = vrot.lane.b32.xlu0 %v710, 126
    %v768 = vpop.permute.xlu0 %767
    %769 = vrot.lane.b32.xlu0 %v711, 126
    %v770 = vpop.permute.xlu0 %769
    %771 = vrot.lane.b32.xlu0 %v712, 126
    %v772 = vpop.permute.xlu0 %771
    %773 = vrot.lane.b32.xlu0 %v713, 126
    %v774 = vpop.permute.xlu0 %773
    %775 = vrot.lane.b32.xlu0 %v714, 126
    %v776 = vpop.permute.xlu0 %775
    %777 = vrot.lane.b32.xlu0 %v715, 126
    %v778 = vpop.permute.xlu0 %777
    %779 = vrot.lane.b32.xlu0 %v716, 126
    %v780 = vpop.permute.xlu0 %779
    %781 = vrot.lane.b32.xlu0 %v717, 126
    %v782 = vpop.permute.xlu0 %781
    %783 = vrot.lane.b32.xlu0 %v718, 126
    %v784 = vpop.permute.xlu0 %783
    %785 = vrot.lane.b32.xlu0 %v719, 126
    %v786 = vpop.permute.xlu0 %785
    %787 = vrot.lane.b32.xlu0 %v720, 126
    %v788 = vpop.permute.xlu0 %787
    %789 = vrot.lane.b32.xlu0 %v721, 126
    %v790 = vpop.permute.xlu0 %789
    %791 = vrot.lane.b32.xlu0 %v722, 126
    %v792 = vpop.permute.xlu0 %791
    %793 = vrot.lane.b32.xlu0 %v723, 126
    %v794 = vpop.permute.xlu0 %793
    %795 = vrot.lane.b32.xlu0 %v724, 126
    %v796 = vpop.permute.xlu0 %795
    %v821 = vadd.f32 %v677, %v750
    %v822 = vadd.f32 %v678, %v752
    %v823 = vadd.f32 %v679, %v754
    %v824 = vadd.f32 %v680, %v756
    %v825 = vadd.f32 %v681, %v758
    %v826 = vadd.f32 %v682, %v760
    %v827 = vadd.f32 %v683, %v762
    %v828 = vadd.f32 %v684, %v764
    %v829 = vadd.f32 %v685, %v766
    %v830 = vadd.f32 %v686, %v768
    %v831 = vadd.f32 %v687, %v770
    %v832 = vadd.f32 %v688, %v772
    %v833 = vadd.f32 %v689, %v774
    %v834 = vadd.f32 %v690, %v776
    %v835 = vadd.f32 %v691, %v778
    %v836 = vadd.f32 %v692, %v780
    %v837 = vadd.f32 %v693, %v782
    %v838 = vadd.f32 %v694, %v784
    %v839 = vadd.f32 %v695, %v786
    %v840 = vadd.f32 %v696, %v788
    %v841 = vadd.f32 %v697, %v790
    %v842 = vadd.f32 %v698, %v792
    %v843 = vadd.f32 %v699, %v794
    %v844 = vadd.f32 %v700, %v796
    %845 = vrot.lane.b32.xlu0 %v557, 125
    %v846 = vpop.permute.xlu0 %845
    %847 = vrot.lane.b32.xlu0 %v558, 125
    %v848 = vpop.permute.xlu0 %847
    %849 = vrot.lane.b32.xlu0 %v559, 125
    %v850 = vpop.permute.xlu0 %849
    %851 = vrot.lane.b32.xlu0 %v560, 125
    %v852 = vpop.permute.xlu0 %851
    %853 = vrot.lane.b32.xlu0 %v561, 125
    %v854 = vpop.permute.xlu0 %853
    %855 = vrot.lane.b32.xlu0 %v562, 125
    %v856 = vpop.permute.xlu0 %855
    %857 = vrot.lane.b32.xlu0 %v563, 125
    %v858 = vpop.permute.xlu0 %857
    %859 = vrot.lane.b32.xlu0 %v564, 125
    %v860 = vpop.permute.xlu0 %859
    %861 = vrot.lane.b32.xlu0 %v565, 125
    %v862 = vpop.permute.xlu0 %861
    %863 = vrot.lane.b32.xlu0 %v566, 125
    %v864 = vpop.permute.xlu0 %863
    %865 = vrot.lane.b32.xlu0 %v567, 125
    %v866 = vpop.permute.xlu0 %865
    %867 = vrot.lane.b32.xlu0 %v568, 125
    %v868 = vpop.permute.xlu0 %867
    %869 = vrot.lane.b32.xlu0 %v569, 125
    %v870 = vpop.permute.xlu0 %869
    %871 = vrot.lane.b32.xlu0 %v570, 125
    %v872 = vpop.permute.xlu0 %871
    %873 = vrot.lane.b32.xlu0 %v571, 125
    %v874 = vpop.permute.xlu0 %873
    %875 = vrot.lane.b32.xlu0 %v572, 125
    %v876 = vpop.permute.xlu0 %875
    %877 = vrot.lane.b32.xlu0 %v573, 125
    %v878 = vpop.permute.xlu0 %877
    %879 = vrot.lane.b32.xlu0 %v574, 125
    %v880 = vpop.permute.xlu0 %879
    %881 = vrot.lane.b32.xlu0 %v575, 125
    %v882 = vpop.permute.xlu0 %881
    %883 = vrot.lane.b32.xlu0 %v576, 125
    %v884 = vpop.permute.xlu0 %883
    %885 = vrot.lane.b32.xlu0 %v577, 125
    %v886 = vpop.permute.xlu0 %885
    %887 = vrot.lane.b32.xlu0 %v578, 125
    %v888 = vpop.permute.xlu0 %887
    %889 = vrot.lane.b32.xlu0 %v579, 125
    %v890 = vpop.permute.xlu0 %889
    %891 = vrot.lane.b32.xlu0 %v580, 125
    %v892 = vpop.permute.xlu0 %891
    %v917 = vadd.f32 %v821, %v846
    %v918 = vadd.f32 %v822, %v848
    %v919 = vadd.f32 %v823, %v850
    %v920 = vadd.f32 %v824, %v852
    %v921 = vadd.f32 %v825, %v854
    %v922 = vadd.f32 %v826, %v856
    %v923 = vadd.f32 %v827, %v858
    %v924 = vadd.f32 %v828, %v860
    %v925 = vadd.f32 %v829, %v862
    %v926 = vadd.f32 %v830, %v864
    %v927 = vadd.f32 %v831, %v866
    %v928 = vadd.f32 %v832, %v868
    %v929 = vadd.f32 %v833, %v870
    %v930 = vadd.f32 %v834, %v872
    %v931 = vadd.f32 %v835, %v874
    %v932 = vadd.f32 %v836, %v876
    %v933 = vadd.f32 %v837, %v878
    %v934 = vadd.f32 %v838, %v880
    %v935 = vadd.f32 %v839, %v882
    %v936 = vadd.f32 %v840, %v884
    %v937 = vadd.f32 %v841, %v886
    %v938 = vadd.f32 %v842, %v888
    %v939 = vadd.f32 %v843, %v890
    %v940 = vadd.f32 %v844, %v892
    %965 = vrot.lane.b32.xlu0 %v533, 124
    %v966 = vpop.permute.xlu0 %965
    %967 = vrot.lane.b32.xlu0 %v534, 124
    %v968 = vpop.permute.xlu0 %967
    %969 = vrot.lane.b32.xlu0 %v535, 124
    %v970 = vpop.permute.xlu0 %969
    %971 = vrot.lane.b32.xlu0 %v536, 124
    %v972 = vpop.permute.xlu0 %971
    %973 = vrot.lane.b32.xlu0 %v537, 124
    %v974 = vpop.permute.xlu0 %973
    %975 = vrot.lane.b32.xlu0 %v538, 124
    %v976 = vpop.permute.xlu0 %975
    %977 = vrot.lane.b32.xlu0 %v539, 124
    %v978 = vpop.permute.xlu0 %977
    %979 = vrot.lane.b32.xlu0 %v540, 124
    %v980 = vpop.permute.xlu0 %979
    %981 = vrot.lane.b32.xlu0 %v541, 124
    %v982 = vpop.permute.xlu0 %981
    %983 = vrot.lane.b32.xlu0 %v542, 124
    %v984 = vpop.permute.xlu0 %983
    %985 = vrot.lane.b32.xlu0 %v543, 124
    %v986 = vpop.permute.xlu0 %985
    %987 = vrot.lane.b32.xlu0 %v544, 124
    %v988 = vpop.permute.xlu0 %987
    %989 = vrot.lane.b32.xlu0 %v545, 124
    %v990 = vpop.permute.xlu0 %989
    %991 = vrot.lane.b32.xlu0 %v546, 124
    %v992 = vpop.permute.xlu0 %991
    %993 = vrot.lane.b32.xlu0 %v547, 124
    %v994 = vpop.permute.xlu0 %993
    %995 = vrot.lane.b32.xlu0 %v548, 124
    %v996 = vpop.permute.xlu0 %995
    %997 = vrot.lane.b32.xlu0 %v549, 124
    %v998 = vpop.permute.xlu0 %997
    %999 = vrot.lane.b32.xlu0 %v550, 124
    %v1000 = vpop.permute.xlu0 %999
    %1001 = vrot.lane.b32.xlu0 %v551, 124
    %v1002 = vpop.permute.xlu0 %1001
    %1003 = vrot.lane.b32.xlu0 %v552, 124
    %v1004 = vpop.permute.xlu0 %1003
    %1005 = vrot.lane.b32.xlu0 %v553, 124
    %v1006 = vpop.permute.xlu0 %1005
    %1007 = vrot.lane.b32.xlu0 %v554, 124
    %v1008 = vpop.permute.xlu0 %1007
    %1009 = vrot.lane.b32.xlu0 %v555, 124
    %v1010 = vpop.permute.xlu0 %1009
    %1011 = vrot.lane.b32.xlu0 %v556, 124
    %v1012 = vpop.permute.xlu0 %1011
    %v1037 = vadd.f32 %v917, %v966
    %v1038 = vadd.f32 %v918, %v968
    %v1039 = vadd.f32 %v919, %v970
    %v1040 = vadd.f32 %v920, %v972
    %v1041 = vadd.f32 %v921, %v974
    %v1042 = vadd.f32 %v922, %v976
    %v1043 = vadd.f32 %v923, %v978
    %v1044 = vadd.f32 %v924, %v980
    %v1045 = vadd.f32 %v925, %v982
    %v1046 = vadd.f32 %v926, %v984
    %v1047 = vadd.f32 %v927, %v986
    %v1048 = vadd.f32 %v928, %v988
    %v1049 = vadd.f32 %v929, %v990
    %v1050 = vadd.f32 %v930, %v992
    %v1051 = vadd.f32 %v931, %v994
    %v1052 = vadd.f32 %v932, %v996
    %v1053 = vadd.f32 %v933, %v998
    %v1054 = vadd.f32 %v934, %v1000
    %v1055 = vadd.f32 %v935, %v1002
    %v1056 = vadd.f32 %v936, %v1004
    %v1057 = vadd.f32 %v937, %v1006
    %v1058 = vadd.f32 %v938, %v1008
    %v1059 = vadd.f32 %v939, %v1010
    %v1060 = vadd.f32 %v940, %v1012
    %vm1085 = vcmask 1041408
    %v1086 = vrot.slane %v1037, 6
    %v1087 = vrot.slane %v1038, 6
    %v1088 = vsel %vm1085, %v1086, %v1087
    %v1089 = vrot.slane %v1039, 6
    %v1090 = vsel %vm1085, %v1087, %v1089
    %v1091 = vrot.slane %v1040, 6
    %v1092 = vrot.slane %v1041, 6
    %v1093 = vsel %vm1085, %v1091, %v1092
    %v1094 = vrot.slane %v1042, 6
    %v1095 = vsel %vm1085, %v1092, %v1094
    %v1096 = vrot.slane %v1043, 6
    %v1097 = vrot.slane %v1044, 6
    %v1098 = vsel %vm1085, %v1096, %v1097
    %v1099 = vrot.slane %v1045, 6
    %v1100 = vsel %vm1085, %v1097, %v1099
    %v1101 = vrot.slane %v1046, 6
    %v1102 = vrot.slane %v1047, 6
    %v1103 = vsel %vm1085, %v1101, %v1102
    %v1104 = vrot.slane %v1048, 6
    %v1105 = vsel %vm1085, %v1102, %v1104
    %v1106 = vrot.slane %v1049, 6
    %v1107 = vrot.slane %v1050, 6
    %v1108 = vsel %vm1085, %v1106, %v1107
    %v1109 = vrot.slane %v1051, 6
    %v1110 = vsel %vm1085, %v1107, %v1109
    %v1111 = vrot.slane %v1052, 6
    %v1112 = vrot.slane %v1053, 6
    %v1113 = vsel %vm1085, %v1111, %v1112
    %v1114 = vrot.slane %v1054, 6
    %v1115 = vsel %vm1085, %v1112, %v1114
    %v1116 = vrot.slane %v1055, 6
    %v1117 = vrot.slane %v1056, 6
    %v1118 = vsel %vm1085, %v1116, %v1117
    %v1119 = vrot.slane %v1057, 6
    %v1120 = vsel %vm1085, %v1117, %v1119
    %v1121 = vrot.slane %v1058, 6
    %v1122 = vrot.slane %v1059, 6
    %v1123 = vsel %vm1085, %v1121, %v1122
    %v1124 = vrot.slane %v1060, 6
    %v1125 = vsel %vm1085, %v1122, %v1124
    %1126 = vrot.lane.b32.xlu0 %v1086, 2
    %v1127 = vpop.permute.xlu0 %1126
    %1128 = vrot.lane.b32.xlu0 %v1088, 2
    %v1129 = vpop.permute.xlu0 %1128
    %1130 = vrot.lane.b32.xlu0 %v1090, 2
    %v1131 = vpop.permute.xlu0 %1130
    %1132 = vrot.lane.b32.xlu0 %v1091, 2
    %v1133 = vpop.permute.xlu0 %1132
    %1134 = vrot.lane.b32.xlu0 %v1093, 2
    %v1135 = vpop.permute.xlu0 %1134
    %1136 = vrot.lane.b32.xlu0 %v1095, 2
    %v1137 = vpop.permute.xlu0 %1136
    %1138 = vrot.lane.b32.xlu0 %v1096, 2
    %v1139 = vpop.permute.xlu0 %1138
    %1140 = vrot.lane.b32.xlu0 %v1098, 2
    %v1141 = vpop.permute.xlu0 %1140
    %1142 = vrot.lane.b32.xlu0 %v1100, 2
    %v1143 = vpop.permute.xlu0 %1142
    %1144 = vrot.lane.b32.xlu0 %v1101, 2
    %v1145 = vpop.permute.xlu0 %1144
    %1146 = vrot.lane.b32.xlu0 %v1103, 2
    %v1147 = vpop.permute.xlu0 %1146
    %1148 = vrot.lane.b32.xlu0 %v1105, 2
    %v1149 = vpop.permute.xlu0 %1148
    %1150 = vrot.lane.b32.xlu0 %v1106, 2
    %v1151 = vpop.permute.xlu0 %1150
    %1152 = vrot.lane.b32.xlu0 %v1108, 2
    %v1153 = vpop.permute.xlu0 %1152
    %1154 = vrot.lane.b32.xlu0 %v1110, 2
    %v1155 = vpop.permute.xlu0 %1154
    %1156 = vrot.lane.b32.xlu0 %v1111, 2
    %v1157 = vpop.permute.xlu0 %1156
    %1158 = vrot.lane.b32.xlu0 %v1113, 2
    %v1159 = vpop.permute.xlu0 %1158
    %1160 = vrot.lane.b32.xlu0 %v1115, 2
    %v1161 = vpop.permute.xlu0 %1160
    %1162 = vrot.lane.b32.xlu0 %v1116, 2
    %v1163 = vpop.permute.xlu0 %1162
    %1164 = vrot.lane.b32.xlu0 %v1118, 2
    %v1165 = vpop.permute.xlu0 %1164
    %1166 = vrot.lane.b32.xlu0 %v1120, 2
    %v1167 = vpop.permute.xlu0 %1166
    %1168 = vrot.lane.b32.xlu0 %v1121, 2
    %v1169 = vpop.permute.xlu0 %1168
    %1170 = vrot.lane.b32.xlu0 %v1123, 2
    %v1171 = vpop.permute.xlu0 %1170
    %1172 = vrot.lane.b32.xlu0 %v1125, 2
    %v1173 = vpop.permute.xlu0 %1172
    %v1198 = vsub.f32 %v9, %v1127
    %v1199 = vsub.f32 %v10, %v1129
    %v1200 = vsub.f32 %v11, %v1131
    %v1201 = vsub.f32 %v12, %v1133
    %v1202 = vsub.f32 %v13, %v1135
    %v1203 = vsub.f32 %v14, %v1137
    %v1204 = vsub.f32 %v15, %v1139
    %v1205 = vsub.f32 %v16, %v1141
    %v1206 = vsub.f32 %v17, %v1143
    %v1207 = vsub.f32 %v18, %v1145
    %v1208 = vsub.f32 %v19, %v1147
    %v1209 = vsub.f32 %v20, %v1149
    %v1210 = vsub.f32 %v21, %v1151
    %v1211 = vsub.f32 %v22, %v1153
    %v1212 = vsub.f32 %v23, %v1155
    %v1213 = vsub.f32 %v24, %v1157
    %v1214 = vsub.f32 %v25, %v1159
    %v1215 = vsub.f32 %v26, %v1161
    %v1216 = vsub.f32 %v27, %v1163
    %v1217 = vsub.f32 %v28, %v1165
    %v1218 = vsub.f32 %v29, %v1167
    %v1219 = vsub.f32 %v30, %v1169
    %v1220 = vsub.f32 %v31, %v1171
    %v1221 = vsub.f32 %v32, %v1173
    %v1222 = vand.u32 2147483647, %v1198
    %v1223 = vand.u32 2147483647, %v1199
    %v1224 = vand.u32 2147483647, %v1200
    %v1225 = vand.u32 2147483647, %v1201
    %v1226 = vand.u32 2147483647, %v1202
    %v1227 = vand.u32 2147483647, %v1203
    %v1228 = vand.u32 2147483647, %v1204
    %v1229 = vand.u32 2147483647, %v1205
    %v1230 = vand.u32 2147483647, %v1206
    %v1231 = vand.u32 2147483647, %v1207
    %v1232 = vand.u32 2147483647, %v1208
    %v1233 = vand.u32 2147483647, %v1209
    %v1234 = vand.u32 2147483647, %v1210
    %v1235 = vand.u32 2147483647, %v1211
    %v1236 = vand.u32 2147483647, %v1212
    %v1237 = vand.u32 2147483647, %v1213
    %v1238 = vand.u32 2147483647, %v1214
    %v1239 = vand.u32 2147483647, %v1215
    %v1240 = vand.u32 2147483647, %v1216
    %v1241 = vand.u32 2147483647, %v1217
    %v1242 = vand.u32 2147483647, %v1218
    %v1243 = vand.u32 2147483647, %v1219
    %v1244 = vand.u32 2147483647, %v1220
    %v1245 = vand.u32 2147483647, %v1221
    %v1246 = vmul.f32 %v1222, 255.0
    %v1247 = vmul.f32 %v1223, 255.0
    %v1248 = vmul.f32 %v1224, 255.0
    %v1249 = vmul.f32 %v1225, 255.0
    %v1250 = vmul.f32 %v1226, 255.0
    %v1251 = vmul.f32 %v1227, 255.0
    %v1252 = vmul.f32 %v1228, 255.0
    %v1253 = vmul.f32 %v1229, 255.0
    %v1254 = vmul.f32 %v1230, 255.0
    %v1255 = vmul.f32 %v1231, 255.0
    %v1256 = vmul.f32 %v1232, 255.0
    %v1257 = vmul.f32 %v1233, 255.0
    %v1258 = vmul.f32 %v1234, 255.0
    %v1259 = vmul.f32 %v1235, 255.0
    %v1260 = vmul.f32 %v1236, 255.0
    %v1261 = vmul.f32 %v1237, 255.0
    %v1262 = vmul.f32 %v1238, 255.0
    %v1263 = vmul.f32 %v1239, 255.0
    %v1264 = vmul.f32 %v1240, 255.0
    %v1265 = vmul.f32 %v1241, 255.0
    %v1266 = vmul.f32 %v1242, 255.0
    %v1267 = vmul.f32 %v1243, 255.0
    %v1268 = vmul.f32 %v1244, 255.0
    %v1269 = vmul.f32 %v1245, 255.0
    %vm1270 = vcmp.gt.f32.partialorder %v1246, 10.0
    %vm1271 = vcmp.gt.f32.partialorder %v1247, 10.0
    %vm1272 = vcmp.gt.f32.partialorder %v1248, 10.0
    %vm1273 = vcmp.gt.f32.partialorder %v1249, 10.0
    %vm1274 = vcmp.gt.f32.partialorder %v1250, 10.0
    %vm1275 = vcmp.gt.f32.partialorder %v1251, 10.0
    %vm1276 = vcmp.gt.f32.partialorder %v1252, 10.0
    %vm1277 = vcmp.gt.f32.partialorder %v1253, 10.0
    %vm1278 = vcmp.gt.f32.partialorder %v1254, 10.0
    %vm1279 = vcmp.gt.f32.partialorder %v1255, 10.0
    %vm1280 = vcmp.gt.f32.partialorder %v1256, 10.0
    %vm1281 = vcmp.gt.f32.partialorder %v1257, 10.0
    %vm1282 = vcmp.gt.f32.partialorder %v1258, 10.0
    %vm1283 = vcmp.gt.f32.partialorder %v1259, 10.0
    %vm1284 = vcmp.gt.f32.partialorder %v1260, 10.0
    %vm1285 = vcmp.gt.f32.partialorder %v1261, 10.0
    %vm1286 = vcmp.gt.f32.partialorder %v1262, 10.0
    %vm1287 = vcmp.gt.f32.partialorder %v1263, 10.0
    %vm1288 = vcmp.gt.f32.partialorder %v1264, 10.0
    %vm1289 = vcmp.gt.f32.partialorder %v1265, 10.0
    %vm1290 = vcmp.gt.f32.partialorder %v1266, 10.0
    %vm1291 = vcmp.gt.f32.partialorder %v1267, 10.0
    %vm1292 = vcmp.gt.f32.partialorder %v1268, 10.0
    %vm1293 = vcmp.gt.f32.partialorder %v1269, 10.0
    %v1294 = vsel %vm1270, 1, 0
    %v1295 = vsel %vm1271, 1, 0
    %v1296 = vsel %vm1272, 1, 0
    %v1297 = vsel %vm1273, 1, 0
    %v1298 = vsel %vm1274, 1, 0
    %v1299 = vsel %vm1275, 1, 0
    %v1300 = vsel %vm1276, 1, 0
    %v1301 = vsel %vm1277, 1, 0
    %v1302 = vsel %vm1278, 1, 0
    %v1303 = vsel %vm1279, 1, 0
    %v1304 = vsel %vm1280, 1, 0
    %v1305 = vsel %vm1281, 1, 0
    %v1306 = vsel %vm1282, 1, 0
    %v1307 = vsel %vm1283, 1, 0
    %v1308 = vsel %vm1284, 1, 0
    %v1309 = vsel %vm1285, 1, 0
    %v1310 = vsel %vm1286, 1, 0
    %v1311 = vsel %vm1287, 1, 0
    %v1312 = vsel %vm1288, 1, 0
    %v1313 = vsel %vm1289, 1, 0
    %v1314 = vsel %vm1290, 1, 0
    %v1315 = vsel %vm1291, 1, 0
    %v1316 = vsel %vm1292, 1, 0
    %v1317 = vsel %vm1293, 1, 0
    %v1318 = vcvt.s32.f32 %v1294
    %v1319 = vcvt.s32.f32 %v1295
    %v1320 = vcvt.s32.f32 %v1296
    %v1321 = vcvt.s32.f32 %v1297
    %v1322 = vcvt.s32.f32 %v1298
    %v1323 = vcvt.s32.f32 %v1299
    %v1324 = vcvt.s32.f32 %v1300
    %v1325 = vcvt.s32.f32 %v1301
    %v1326 = vcvt.s32.f32 %v1302
    %v1327 = vcvt.s32.f32 %v1303
    %v1328 = vcvt.s32.f32 %v1304
    %v1329 = vcvt.s32.f32 %v1305
    %v1330 = vcvt.s32.f32 %v1306
    %v1331 = vcvt.s32.f32 %v1307
    %v1332 = vcvt.s32.f32 %v1308
    %v1333 = vcvt.s32.f32 %v1309
    %v1334 = vcvt.s32.f32 %v1310
    %v1335 = vcvt.s32.f32 %v1311
    %v1336 = vcvt.s32.f32 %v1312
    %v1337 = vcvt.s32.f32 %v1313
    %v1338 = vcvt.s32.f32 %v1314
    %v1339 = vcvt.s32.f32 %v1315
    %v1340 = vcvt.s32.f32 %v1316
    %v1341 = vcvt.s32.f32 %v1317
    %v1342 = vmul.f32 %v1318, 0.070766374
    %v1343 = vmul.f32 %v1319, 0.070766374
    %v1344 = vmul.f32 %v1320, 0.070766374
    %v1345 = vmul.f32 %v1321, 0.070766374
    %v1346 = vmul.f32 %v1322, 0.070766374
    %v1347 = vmul.f32 %v1323, 0.070766374
    %v1348 = vmul.f32 %v1324, 0.070766374
    %v1349 = vmul.f32 %v1325, 0.070766374
    %v1350 = vmul.f32 %v1326, 0.070766374
    %v1351 = vmul.f32 %v1327, 0.070766374
    %v1352 = vmul.f32 %v1328, 0.070766374
    %v1353 = vmul.f32 %v1329, 0.070766374
    %v1354 = vmul.f32 %v1330, 0.070766374
    %v1355 = vmul.f32 %v1331, 0.070766374
    %v1356 = vmul.f32 %v1332, 0.070766374
    %v1357 = vmul.f32 %v1333, 0.070766374
    %v1358 = vmul.f32 %v1334, 0.070766374
    %v1359 = vmul.f32 %v1335, 0.070766374
    %v1360 = vmul.f32 %v1336, 0.070766374
    %v1361 = vmul.f32 %v1337, 0.070766374
    %v1362 = vmul.f32 %v1338, 0.070766374
    %v1363 = vmul.f32 %v1339, 0.070766374
    %v1364 = vmul.f32 %v1340, 0.070766374
    %v1365 = vmul.f32 %v1341, 0.070766374
    %v1366 = vmul.f32 %v1318, 0.2444604
    %v1367 = vmul.f32 %v1319, 0.2444604
    %v1368 = vmul.f32 %v1320, 0.2444604
    %v1369 = vmul.f32 %v1321, 0.2444604
    %v1370 = vmul.f32 %v1322, 0.2444604
    %v1371 = vmul.f32 %v1323, 0.2444604
    %v1372 = vmul.f32 %v1324, 0.2444604
    %v1373 = vmul.f32 %v1325, 0.2444604
    %v1374 = vmul.f32 %v1326, 0.2444604
    %v1375 = vmul.f32 %v1327, 0.2444604
    %v1376 = vmul.f32 %v1328, 0.2444604
    %v1377 = vmul.f32 %v1329, 0.2444604
    %v1378 = vmul.f32 %v1330, 0.2444604
    %v1379 = vmul.f32 %v1331, 0.2444604
    %v1380 = vmul.f32 %v1332, 0.2444604
    %v1381 = vmul.f32 %v1333, 0.2444604
    %v1382 = vmul.f32 %v1334, 0.2444604
    %v1383 = vmul.f32 %v1335, 0.2444604
    %v1384 = vmul.f32 %v1336, 0.2444604
    %v1385 = vmul.f32 %v1337, 0.2444604
    %v1386 = vmul.f32 %v1338, 0.2444604
    %v1387 = vmul.f32 %v1339, 0.2444604
    %v1388 = vmul.f32 %v1340, 0.2444604
    %v1389 = vmul.f32 %v1341, 0.2444604
    %v1414 = vrot.slane %v1366, 1
    %v1415 = vrot.slane %v1367, 1
    %v1416 = vsel %vm105, %v1414, %v1415
    %v1417 = vrot.slane %v1368, 1
    %v1418 = vsel %vm105, %v1415, %v1417
    %v1419 = vrot.slane %v1369, 1
    %v1420 = vrot.slane %v1370, 1
    %v1421 = vsel %vm105, %v1419, %v1420
    %v1422 = vrot.slane %v1371, 1
    %v1423 = vsel %vm105, %v1420, %v1422
    %v1424 = vrot.slane %v1372, 1
    %v1425 = vrot.slane %v1373, 1
    %v1426 = vsel %vm105, %v1424, %v1425
    %v1427 = vrot.slane %v1374, 1
    %v1428 = vsel %vm105, %v1425, %v1427
    %v1429 = vrot.slane %v1375, 1
    %v1430 = vrot.slane %v1376, 1
    %v1431 = vsel %vm105, %v1429, %v1430
    %v1432 = vrot.slane %v1377, 1
    %v1433 = vsel %vm105, %v1430, %v1432
    %v1434 = vrot.slane %v1378, 1
    %v1435 = vrot.slane %v1379, 1
    %v1436 = vsel %vm105, %v1434, %v1435
    %v1437 = vrot.slane %v1380, 1
    %v1438 = vsel %vm105, %v1435, %v1437
    %v1439 = vrot.slane %v1381, 1
    %v1440 = vrot.slane %v1382, 1
    %v1441 = vsel %vm105, %v1439, %v1440
    %v1442 = vrot.slane %v1383, 1
    %v1443 = vsel %vm105, %v1440, %v1442
    %v1444 = vrot.slane %v1384, 1
    %v1445 = vrot.slane %v1385, 1
    %v1446 = vsel %vm105, %v1444, %v1445
    %v1447 = vrot.slane %v1386, 1
    %v1448 = vsel %vm105, %v1445, %v1447
    %v1449 = vrot.slane %v1387, 1
    %v1450 = vrot.slane %v1388, 1
    %v1451 = vsel %vm105, %v1449, %v1450
    %v1452 = vrot.slane %v1389, 1
    %v1453 = vsel %vm105, %v1450, %v1452
    %v1478 = vadd.f32 %v1342, %v1416
    %v1479 = vadd.f32 %v1343, %v1418
    %v1480 = vadd.f32 %v1344, %v1417
    %v1481 = vadd.f32 %v1345, %v1421
    %v1482 = vadd.f32 %v1346, %v1423
    %v1483 = vadd.f32 %v1347, %v1422
    %v1484 = vadd.f32 %v1348, %v1426
    %v1485 = vadd.f32 %v1349, %v1428
    %v1486 = vadd.f32 %v1350, %v1427
    %v1487 = vadd.f32 %v1351, %v1431
    %v1488 = vadd.f32 %v1352, %v1433
    %v1489 = vadd.f32 %v1353, %v1432
    %v1490 = vadd.f32 %v1354, %v1436
    %v1491 = vadd.f32 %v1355, %v1438
    %v1492 = vadd.f32 %v1356, %v1437
    %v1493 = vadd.f32 %v1357, %v1441
    %v1494 = vadd.f32 %v1358, %v1443
    %v1495 = vadd.f32 %v1359, %v1442
    %v1496 = vadd.f32 %v1360, %v1446
    %v1497 = vadd.f32 %v1361, %v1448
    %v1498 = vadd.f32 %v1362, %v1447
    %v1499 = vadd.f32 %v1363, %v1451
    %v1500 = vadd.f32 %v1364, %v1453
    %v1501 = vadd.f32 %v1365, %v1452
    %v1502 = vmul.f32 %v1318, 0.36954647
    %v1503 = vmul.f32 %v1319, 0.36954647
    %v1504 = vmul.f32 %v1320, 0.36954647
    %v1505 = vmul.f32 %v1321, 0.36954647
    %v1506 = vmul.f32 %v1322, 0.36954647
    %v1507 = vmul.f32 %v1323, 0.36954647
    %v1508 = vmul.f32 %v1324, 0.36954647
    %v1509 = vmul.f32 %v1325, 0.36954647
    %v1510 = vmul.f32 %v1326, 0.36954647
    %v1511 = vmul.f32 %v1327, 0.36954647
    %v1512 = vmul.f32 %v1328, 0.36954647
    %v1513 = vmul.f32 %v1329, 0.36954647
    %v1514 = vmul.f32 %v1330, 0.36954647
    %v1515 = vmul.f32 %v1331, 0.36954647
    %v1516 = vmul.f32 %v1332, 0.36954647
    %v1517 = vmul.f32 %v1333, 0.36954647
    %v1518 = vmul.f32 %v1334, 0.36954647
    %v1519 = vmul.f32 %v1335, 0.36954647
    %v1520 = vmul.f32 %v1336, 0.36954647
    %v1521 = vmul.f32 %v1337, 0.36954647
    %v1522 = vmul.f32 %v1338, 0.36954647
    %v1523 = vmul.f32 %v1339, 0.36954647
    %v1524 = vmul.f32 %v1340, 0.36954647
    %v1525 = vmul.f32 %v1341, 0.36954647
    %v1550 = vrot.slane %v1502, 2
    %v1551 = vrot.slane %v1503, 2
    %v1552 = vsel %vm242, %v1550, %v1551
    %v1553 = vrot.slane %v1504, 2
    %v1554 = vsel %vm242, %v1551, %v1553
    %v1555 = vrot.slane %v1505, 2
    %v1556 = vrot.slane %v1506, 2
    %v1557 = vsel %vm242, %v1555, %v1556
    %v1558 = vrot.slane %v1507, 2
    %v1559 = vsel %vm242, %v1556, %v1558
    %v1560 = vrot.slane %v1508, 2
    %v1561 = vrot.slane %v1509, 2
    %v1562 = vsel %vm242, %v1560, %v1561
    %v1563 = vrot.slane %v1510, 2
    %v1564 = vsel %vm242, %v1561, %v1563
    %v1565 = vrot.slane %v1511, 2
    %v1566 = vrot.slane %v1512, 2
    %v1567 = vsel %vm242, %v1565, %v1566
    %v1568 = vrot.slane %v1513, 2
    %v1569 = vsel %vm242, %v1566, %v1568
    %v1570 = vrot.slane %v1514, 2
    %v1571 = vrot.slane %v1515, 2
    %v1572 = vsel %vm242, %v1570, %v1571
    %v1573 = vrot.slane %v1516, 2
    %v1574 = vsel %vm242, %v1571, %v1573
    %v1575 = vrot.slane %v1517, 2
    %v1576 = vrot.slane %v1518, 2
    %v1577 = vsel %vm242, %v1575, %v1576
    %v1578 = vrot.slane %v1519, 2
    %v1579 = vsel %vm242, %v1576, %v1578
    %v1580 = vrot.slane %v1520, 2
    %v1581 = vrot.slane %v1521, 2
    %v1582 = vsel %vm242, %v1580, %v1581
    %v1583 = vrot.slane %v1522, 2
    %v1584 = vsel %vm242, %v1581, %v1583
    %v1585 = vrot.slane %v1523, 2
    %v1586 = vrot.slane %v1524, 2
    %v1587 = vsel %vm242, %v1585, %v1586
    %v1588 = vrot.slane %v1525, 2
    %v1589 = vsel %vm242, %v1586, %v1588
    %v1614 = vadd.f32 %v1478, %v1552
    %v1615 = vadd.f32 %v1479, %v1554
    %v1616 = vadd.f32 %v1480, %v1553
    %v1617 = vadd.f32 %v1481, %v1557
    %v1618 = vadd.f32 %v1482, %v1559
    %v1619 = vadd.f32 %v1483, %v1558
    %v1620 = vadd.f32 %v1484, %v1562
    %v1621 = vadd.f32 %v1485, %v1564
    %v1622 = vadd.f32 %v1486, %v1563
    %v1623 = vadd.f32 %v1487, %v1567
    %v1624 = vadd.f32 %v1488, %v1569
    %v1625 = vadd.f32 %v1489, %v1568
    %v1626 = vadd.f32 %v1490, %v1572
    %v1627 = vadd.f32 %v1491, %v1574
    %v1628 = vadd.f32 %v1492, %v1573
    %v1629 = vadd.f32 %v1493, %v1577
    %v1630 = vadd.f32 %v1494, %v1579
    %v1631 = vadd.f32 %v1495, %v1578
    %v1632 = vadd.f32 %v1496, %v1582
    %v1633 = vadd.f32 %v1497, %v1584
    %v1634 = vadd.f32 %v1498, %v1583
    %v1635 = vadd.f32 %v1499, %v1587
    %v1636 = vadd.f32 %v1500, %v1589
    %v1637 = vadd.f32 %v1501, %v1588
    %v1638 = vrot.slane %v1366, 3
    %v1639 = vrot.slane %v1367, 3
    %v1640 = vsel %vm331, %v1638, %v1639
    %v1641 = vrot.slane %v1368, 3
    %v1642 = vsel %vm331, %v1639, %v1641
    %v1643 = vrot.slane %v1369, 3
    %v1644 = vrot.slane %v1370, 3
    %v1645 = vsel %vm331, %v1643, %v1644
    %v1646 = vrot.slane %v1371, 3
    %v1647 = vsel %vm331, %v1644, %v1646
    %v1648 = vrot.slane %v1372, 3
    %v1649 = vrot.slane %v1373, 3
    %v1650 = vsel %vm331, %v1648, %v1649
    %v1651 = vrot.slane %v1374, 3
    %v1652 = vsel %vm331, %v1649, %v1651
    %v1653 = vrot.slane %v1375, 3
    %v1654 = vrot.slane %v1376, 3
    %v1655 = vsel %vm331, %v1653, %v1654
    %v1656 = vrot.slane %v1377, 3
    %v1657 = vsel %vm331, %v1654, %v1656
    %v1658 = vrot.slane %v1378, 3
    %v1659 = vrot.slane %v1379, 3
    %v1660 = vsel %vm331, %v1658, %v1659
    %v1661 = vrot.slane %v1380, 3
    %v1662 = vsel %vm331, %v1659, %v1661
    %v1663 = vrot.slane %v1381, 3
    %v1664 = vrot.slane %v1382, 3
    %v1665 = vsel %vm331, %v1663, %v1664
    %v1666 = vrot.slane %v1383, 3
    %v1667 = vsel %vm331, %v1664, %v1666
    %v1668 = vrot.slane %v1384, 3
    %v1669 = vrot.slane %v1385, 3
    %v1670 = vsel %vm331, %v1668, %v1669
    %v1671 = vrot.slane %v1386, 3
    %v1672 = vsel %vm331, %v1669, %v1671
    %v1673 = vrot.slane %v1387, 3
    %v1674 = vrot.slane %v1388, 3
    %v1675 = vsel %vm331, %v1673, %v1674
    %v1676 = vrot.slane %v1389, 3
    %v1677 = vsel %vm331, %v1674, %v1676
    %v1702 = vadd.f32 %v1614, %v1640
    %v1703 = vadd.f32 %v1615, %v1642
    %v1704 = vadd.f32 %v1616, %v1641
    %v1705 = vadd.f32 %v1617, %v1645
    %v1706 = vadd.f32 %v1618, %v1647
    %v1707 = vadd.f32 %v1619, %v1646
    %v1708 = vadd.f32 %v1620, %v1650
    %v1709 = vadd.f32 %v1621, %v1652
    %v1710 = vadd.f32 %v1622, %v1651
    %v1711 = vadd.f32 %v1623, %v1655
    %v1712 = vadd.f32 %v1624, %v1657
    %v1713 = vadd.f32 %v1625, %v1656
    %v1714 = vadd.f32 %v1626, %v1660
    %v1715 = vadd.f32 %v1627, %v1662
    %v1716 = vadd.f32 %v1628, %v1661
    %v1717 = vadd.f32 %v1629, %v1665
    %v1718 = vadd.f32 %v1630, %v1667
    %v1719 = vadd.f32 %v1631, %v1666
    %v1720 = vadd.f32 %v1632, %v1670
    %v1721 = vadd.f32 %v1633, %v1672
    %v1722 = vadd.f32 %v1634, %v1671
    %v1723 = vadd.f32 %v1635, %v1675
    %v1724 = vadd.f32 %v1636, %v1677
    %v1725 = vadd.f32 %v1637, %v1676
    %v1750 = vrot.slane %v1342, 4
    %v1751 = vrot.slane %v1343, 4
    %v1752 = vsel %vm444, %v1750, %v1751
    %v1753 = vrot.slane %v1344, 4
    %v1754 = vsel %vm444, %v1751, %v1753
    %v1755 = vrot.slane %v1345, 4
    %v1756 = vrot.slane %v1346, 4
    %v1757 = vsel %vm444, %v1755, %v1756
    %v1758 = vrot.slane %v1347, 4
    %v1759 = vsel %vm444, %v1756, %v1758
    %v1760 = vrot.slane %v1348, 4
    %v1761 = vrot.slane %v1349, 4
    %v1762 = vsel %vm444, %v1760, %v1761
    %v1763 = vrot.slane %v1350, 4
    %v1764 = vsel %vm444, %v1761, %v1763
    %v1765 = vrot.slane %v1351, 4
    %v1766 = vrot.slane %v1352, 4
    %v1767 = vsel %vm444, %v1765, %v1766
    %v1768 = vrot.slane %v1353, 4
    %v1769 = vsel %vm444, %v1766, %v1768
    %v1770 = vrot.slane %v1354, 4
    %v1771 = vrot.slane %v1355, 4
    %v1772 = vsel %vm444, %v1770, %v1771
    %v1773 = vrot.slane %v1356, 4
    %v1774 = vsel %vm444, %v1771, %v1773
    %v1775 = vrot.slane %v1357, 4
    %v1776 = vrot.slane %v1358, 4
    %v1777 = vsel %vm444, %v1775, %v1776
    %v1778 = vrot.slane %v1359, 4
    %v1779 = vsel %vm444, %v1776, %v1778
    %v1780 = vrot.slane %v1360, 4
    %v1781 = vrot.slane %v1361, 4
    %v1782 = vsel %vm444, %v1780, %v1781
    %v1783 = vrot.slane %v1362, 4
    %v1784 = vsel %vm444, %v1781, %v1783
    %v1785 = vrot.slane %v1363, 4
    %v1786 = vrot.slane %v1364, 4
    %v1787 = vsel %vm444, %v1785, %v1786
    %v1788 = vrot.slane %v1365, 4
    %v1789 = vsel %vm444, %v1786, %v1788
    %v1814 = vadd.f32 %v1702, %v1752
    %v1815 = vadd.f32 %v1703, %v1754
    %v1816 = vadd.f32 %v1704, %v1753
    %v1817 = vadd.f32 %v1705, %v1757
    %v1818 = vadd.f32 %v1706, %v1759
    %v1819 = vadd.f32 %v1707, %v1758
    %v1820 = vadd.f32 %v1708, %v1762
    %v1821 = vadd.f32 %v1709, %v1764
    %v1822 = vadd.f32 %v1710, %v1763
    %v1823 = vadd.f32 %v1711, %v1767
    %v1824 = vadd.f32 %v1712, %v1769
    %v1825 = vadd.f32 %v1713, %v1768
    %v1826 = vadd.f32 %v1714, %v1772
    %v1827 = vadd.f32 %v1715, %v1774
    %v1828 = vadd.f32 %v1716, %v1773
    %v1829 = vadd.f32 %v1717, %v1777
    %v1830 = vadd.f32 %v1718, %v1779
    %v1831 = vadd.f32 %v1719, %v1778
    %v1832 = vadd.f32 %v1720, %v1782
    %v1833 = vadd.f32 %v1721, %v1784
    %v1834 = vadd.f32 %v1722, %v1783
    %v1835 = vadd.f32 %v1723, %v1787
    %v1836 = vadd.f32 %v1724, %v1789
    %v1837 = vadd.f32 %v1725, %v1788
    %v1838 = vmul.f32 %v1814, 0.070766374
    %v1839 = vmul.f32 %v1815, 0.070766374
    %v1840 = vmul.f32 %v1816, 0.070766374
    %v1841 = vmul.f32 %v1817, 0.070766374
    %v1842 = vmul.f32 %v1818, 0.070766374
    %v1843 = vmul.f32 %v1819, 0.070766374
    %v1844 = vmul.f32 %v1820, 0.070766374
    %v1845 = vmul.f32 %v1821, 0.070766374
    %v1846 = vmul.f32 %v1822, 0.070766374
    %v1847 = vmul.f32 %v1823, 0.070766374
    %v1848 = vmul.f32 %v1824, 0.070766374
    %v1849 = vmul.f32 %v1825, 0.070766374
    %v1850 = vmul.f32 %v1826, 0.070766374
    %v1851 = vmul.f32 %v1827, 0.070766374
    %v1852 = vmul.f32 %v1828, 0.070766374
    %v1853 = vmul.f32 %v1829, 0.070766374
    %v1854 = vmul.f32 %v1830, 0.070766374
    %v1855 = vmul.f32 %v1831, 0.070766374
    %v1856 = vmul.f32 %v1832, 0.070766374
    %v1857 = vmul.f32 %v1833, 0.070766374
    %v1858 = vmul.f32 %v1834, 0.070766374
    %v1859 = vmul.f32 %v1835, 0.070766374
    %v1860 = vmul.f32 %v1836, 0.070766374
    %v1861 = vmul.f32 %v1837, 0.070766374
    %v1862 = vmul.f32 %v1814, 0.2444604
    %v1863 = vmul.f32 %v1815, 0.2444604
    %v1864 = vmul.f32 %v1816, 0.2444604
    %v1865 = vmul.f32 %v1817, 0.2444604
    %v1866 = vmul.f32 %v1818, 0.2444604
    %v1867 = vmul.f32 %v1819, 0.2444604
    %v1868 = vmul.f32 %v1820, 0.2444604
    %v1869 = vmul.f32 %v1821, 0.2444604
    %v1870 = vmul.f32 %v1822, 0.2444604
    %v1871 = vmul.f32 %v1823, 0.2444604
    %v1872 = vmul.f32 %v1824, 0.2444604
    %v1873 = vmul.f32 %v1825, 0.2444604
    %v1874 = vmul.f32 %v1826, 0.2444604
    %v1875 = vmul.f32 %v1827, 0.2444604
    %v1876 = vmul.f32 %v1828, 0.2444604
    %v1877 = vmul.f32 %v1829, 0.2444604
    %v1878 = vmul.f32 %v1830, 0.2444604
    %v1879 = vmul.f32 %v1831, 0.2444604
    %v1880 = vmul.f32 %v1832, 0.2444604
    %v1881 = vmul.f32 %v1833, 0.2444604
    %v1882 = vmul.f32 %v1834, 0.2444604
    %v1883 = vmul.f32 %v1835, 0.2444604
    %v1884 = vmul.f32 %v1836, 0.2444604
    %v1885 = vmul.f32 %v1837, 0.2444604
    %1910 = vrot.lane.b32.xlu0 %v1862, 127
    %v1911 = vpop.permute.xlu0 %1910
    %1912 = vrot.lane.b32.xlu0 %v1863, 127
    %v1913 = vpop.permute.xlu0 %1912
    %1914 = vrot.lane.b32.xlu0 %v1864, 127
    %v1915 = vpop.permute.xlu0 %1914
    %1916 = vrot.lane.b32.xlu0 %v1865, 127
    %v1917 = vpop.permute.xlu0 %1916
    %1918 = vrot.lane.b32.xlu0 %v1866, 127
    %v1919 = vpop.permute.xlu0 %1918
    %1920 = vrot.lane.b32.xlu0 %v1867, 127
    %v1921 = vpop.permute.xlu0 %1920
    %1922 = vrot.lane.b32.xlu0 %v1868, 127
    %v1923 = vpop.permute.xlu0 %1922
    %1924 = vrot.lane.b32.xlu0 %v1869, 127
    %v1925 = vpop.permute.xlu0 %1924
    %1926 = vrot.lane.b32.xlu0 %v1870, 127
    %v1927 = vpop.permute.xlu0 %1926
    %1928 = vrot.lane.b32.xlu0 %v1871, 127
    %v1929 = vpop.permute.xlu0 %1928
    %1930 = vrot.lane.b32.xlu0 %v1872, 127
    %v1931 = vpop.permute.xlu0 %1930
    %1932 = vrot.lane.b32.xlu0 %v1873, 127
    %v1933 = vpop.permute.xlu0 %1932
    %1934 = vrot.lane.b32.xlu0 %v1874, 127
    %v1935 = vpop.permute.xlu0 %1934
    %1936 = vrot.lane.b32.xlu0 %v1875, 127
    %v1937 = vpop.permute.xlu0 %1936
    %1938 = vrot.lane.b32.xlu0 %v1876, 127
    %v1939 = vpop.permute.xlu0 %1938
    %1940 = vrot.lane.b32.xlu0 %v1877, 127
    %v1941 = vpop.permute.xlu0 %1940
    %1942 = vrot.lane.b32.xlu0 %v1878, 127
    %v1943 = vpop.permute.xlu0 %1942
    %1944 = vrot.lane.b32.xlu0 %v1879, 127
    %v1945 = vpop.permute.xlu0 %1944
    %1946 = vrot.lane.b32.xlu0 %v1880, 127
    %v1947 = vpop.permute.xlu0 %1946
    %1948 = vrot.lane.b32.xlu0 %v1881, 127
    %v1949 = vpop.permute.xlu0 %1948
    %1950 = vrot.lane.b32.xlu0 %v1882, 127
    %v1951 = vpop.permute.xlu0 %1950
    %1952 = vrot.lane.b32.xlu0 %v1883, 127
    %v1953 = vpop.permute.xlu0 %1952
    %1954 = vrot.lane.b32.xlu0 %v1884, 127
    %v1955 = vpop.permute.xlu0 %1954
    %1956 = vrot.lane.b32.xlu0 %v1885, 127
    %v1957 = vpop.permute.xlu0 %1956
    %v1982 = vadd.f32 %v1838, %v1911
    %v1983 = vadd.f32 %v1839, %v1913
    %v1984 = vadd.f32 %v1840, %v1915
    %v1985 = vadd.f32 %v1841, %v1917
    %v1986 = vadd.f32 %v1842, %v1919
    %v1987 = vadd.f32 %v1843, %v1921
    %v1988 = vadd.f32 %v1844, %v1923
    %v1989 = vadd.f32 %v1845, %v1925
    %v1990 = vadd.f32 %v1846, %v1927
    %v1991 = vadd.f32 %v1847, %v1929
    %v1992 = vadd.f32 %v1848, %v1931
    %v1993 = vadd.f32 %v1849, %v1933
    %v1994 = vadd.f32 %v1850, %v1935
    %v1995 = vadd.f32 %v1851, %v1937
    %v1996 = vadd.f32 %v1852, %v1939
    %v1997 = vadd.f32 %v1853, %v1941
    %v1998 = vadd.f32 %v1854, %v1943
    %v1999 = vadd.f32 %v1855, %v1945
    %v2000 = vadd.f32 %v1856, %v1947
    %v2001 = vadd.f32 %v1857, %v1949
    %v2002 = vadd.f32 %v1858, %v1951
    %v2003 = vadd.f32 %v1859, %v1953
    %v2004 = vadd.f32 %v1860, %v1955
    %v2005 = vadd.f32 %v1861, %v1957
    %v2006 = vmul.f32 %v1814, 0.36954647
    %v2007 = vmul.f32 %v1815, 0.36954647
    %v2008 = vmul.f32 %v1816, 0.36954647
    %v2009 = vmul.f32 %v1817, 0.36954647
    %v2010 = vmul.f32 %v1818, 0.36954647
    %v2011 = vmul.f32 %v1819, 0.36954647
    %v2012 = vmul.f32 %v1820, 0.36954647
    %v2013 = vmul.f32 %v1821, 0.36954647
    %v2014 = vmul.f32 %v1822, 0.36954647
    %v2015 = vmul.f32 %v1823, 0.36954647
    %v2016 = vmul.f32 %v1824, 0.36954647
    %v2017 = vmul.f32 %v1825, 0.36954647
    %v2018 = vmul.f32 %v1826, 0.36954647
    %v2019 = vmul.f32 %v1827, 0.36954647
    %v2020 = vmul.f32 %v1828, 0.36954647
    %v2021 = vmul.f32 %v1829, 0.36954647
    %v2022 = vmul.f32 %v1830, 0.36954647
    %v2023 = vmul.f32 %v1831, 0.36954647
    %v2024 = vmul.f32 %v1832, 0.36954647
    %v2025 = vmul.f32 %v1833, 0.36954647
    %v2026 = vmul.f32 %v1834, 0.36954647
    %v2027 = vmul.f32 %v1835, 0.36954647
    %v2028 = vmul.f32 %v1836, 0.36954647
    %v2029 = vmul.f32 %v1837, 0.36954647
    %2054 = vrot.lane.b32.xlu0 %v2006, 126
    %v2055 = vpop.permute.xlu0 %2054
    %2056 = vrot.lane.b32.xlu0 %v2007, 126
    %v2057 = vpop.permute.xlu0 %2056
    %2058 = vrot.lane.b32.xlu0 %v2008, 126
    %v2059 = vpop.permute.xlu0 %2058
    %2060 = vrot.lane.b32.xlu0 %v2009, 126
    %v2061 = vpop.permute.xlu0 %2060
    %2062 = vrot.lane.b32.xlu0 %v2010, 126
    %v2063 = vpop.permute.xlu0 %2062
    %2064 = vrot.lane.b32.xlu0 %v2011, 126
    %v2065 = vpop.permute.xlu0 %2064
    %2066 = vrot.lane.b32.xlu0 %v2012, 126
    %v2067 = vpop.permute.xlu0 %2066
    %2068 = vrot.lane.b32.xlu0 %v2013, 126
    %v2069 = vpop.permute.xlu0 %2068
    %2070 = vrot.lane.b32.xlu0 %v2014, 126
    %v2071 = vpop.permute.xlu0 %2070
    %2072 = vrot.lane.b32.xlu0 %v2015, 126
    %v2073 = vpop.permute.xlu0 %2072
    %2074 = vrot.lane.b32.xlu0 %v2016, 126
    %v2075 = vpop.permute.xlu0 %2074
    %2076 = vrot.lane.b32.xlu0 %v2017, 126
    %v2077 = vpop.permute.xlu0 %2076
    %2078 = vrot.lane.b32.xlu0 %v2018, 126
    %v2079 = vpop.permute.xlu0 %2078
    %2080 = vrot.lane.b32.xlu0 %v2019, 126
    %v2081 = vpop.permute.xlu0 %2080
    %2082 = vrot.lane.b32.xlu0 %v2020, 126
    %v2083 = vpop.permute.xlu0 %2082
    %2084 = vrot.lane.b32.xlu0 %v2021, 126
    %v2085 = vpop.permute.xlu0 %2084
    %2086 = vrot.lane.b32.xlu0 %v2022, 126
    %v2087 = vpop.permute.xlu0 %2086
    %2088 = vrot.lane.b32.xlu0 %v2023, 126
    %v2089 = vpop.permute.xlu0 %2088
    %2090 = vrot.lane.b32.xlu0 %v2024, 126
    %v2091 = vpop.permute.xlu0 %2090
    %2092 = vrot.lane.b32.xlu0 %v2025, 126
    %v2093 = vpop.permute.xlu0 %2092
    %2094 = vrot.lane.b32.xlu0 %v2026, 126
    %v2095 = vpop.permute.xlu0 %2094
    %2096 = vrot.lane.b32.xlu0 %v2027, 126
    %v2097 = vpop.permute.xlu0 %2096
    %2098 = vrot.lane.b32.xlu0 %v2028, 126
    %v2099 = vpop.permute.xlu0 %2098
    %2100 = vrot.lane.b32.xlu0 %v2029, 126
    %v2101 = vpop.permute.xlu0 %2100
    %v2126 = vadd.f32 %v1982, %v2055
    %v2127 = vadd.f32 %v1983, %v2057
    %v2128 = vadd.f32 %v1984, %v2059
    %v2129 = vadd.f32 %v1985, %v2061
    %v2130 = vadd.f32 %v1986, %v2063
    %v2131 = vadd.f32 %v1987, %v2065
    %v2132 = vadd.f32 %v1988, %v2067
    %v2133 = vadd.f32 %v1989, %v2069
    %v2134 = vadd.f32 %v1990, %v2071
    %v2135 = vadd.f32 %v1991, %v2073
    %v2136 = vadd.f32 %v1992, %v2075
    %v2137 = vadd.f32 %v1993, %v2077
    %v2138 = vadd.f32 %v1994, %v2079
    %v2139 = vadd.f32 %v1995, %v2081
    %v2140 = vadd.f32 %v1996, %v2083
    %v2141 = vadd.f32 %v1997, %v2085
    %v2142 = vadd.f32 %v1998, %v2087
    %v2143 = vadd.f32 %v1999, %v2089
    %v2144 = vadd.f32 %v2000, %v2091
    %v2145 = vadd.f32 %v2001, %v2093
    %v2146 = vadd.f32 %v2002, %v2095
    %v2147 = vadd.f32 %v2003, %v2097
    %v2148 = vadd.f32 %v2004, %v2099
    %v2149 = vadd.f32 %v2005, %v2101
    %2150 = vrot.lane.b32.xlu0 %v1862, 125
    %v2151 = vpop.permute.xlu0 %2150
    %2152 = vrot.lane.b32.xlu0 %v1863, 125
    %v2153 = vpop.permute.xlu0 %2152
    %2154 = vrot.lane.b32.xlu0 %v1864, 125
    %v2155 = vpop.permute.xlu0 %2154
    %2156 = vrot.lane.b32.xlu0 %v1865, 125
    %v2157 = vpop.permute.xlu0 %2156
    %2158 = vrot.lane.b32.xlu0 %v1866, 125
    %v2159 = vpop.permute.xlu0 %2158
    %2160 = vrot.lane.b32.xlu0 %v1867, 125
    %v2161 = vpop.permute.xlu0 %2160
    %2162 = vrot.lane.b32.xlu0 %v1868, 125
    %v2163 = vpop.permute.xlu0 %2162
    %2164 = vrot.lane.b32.xlu0 %v1869, 125
    %v2165 = vpop.permute.xlu0 %2164
    %2166 = vrot.lane.b32.xlu0 %v1870, 125
    %v2167 = vpop.permute.xlu0 %2166
    %2168 = vrot.lane.b32.xlu0 %v1871, 125
    %v2169 = vpop.permute.xlu0 %2168
    %2170 = vrot.lane.b32.xlu0 %v1872, 125
    %v2171 = vpop.permute.xlu0 %2170
    %2172 = vrot.lane.b32.xlu0 %v1873, 125
    %v2173 = vpop.permute.xlu0 %2172
    %2174 = vrot.lane.b32.xlu0 %v1874, 125
    %v2175 = vpop.permute.xlu0 %2174
    %2176 = vrot.lane.b32.xlu0 %v1875, 125
    %v2177 = vpop.permute.xlu0 %2176
    %2178 = vrot.lane.b32.xlu0 %v1876, 125
    %v2179 = vpop.permute.xlu0 %2178
    %2180 = vrot.lane.b32.xlu0 %v1877, 125
    %v2181 = vpop.permute.xlu0 %2180
    %2182 = vrot.lane.b32.xlu0 %v1878, 125
    %v2183 = vpop.permute.xlu0 %2182
    %2184 = vrot.lane.b32.xlu0 %v1879, 125
    %v2185 = vpop.permute.xlu0 %2184
    %2186 = vrot.lane.b32.xlu0 %v1880, 125
    %v2187 = vpop.permute.xlu0 %2186
    %2188 = vrot.lane.b32.xlu0 %v1881, 125
    %v2189 = vpop.permute.xlu0 %2188
    %2190 = vrot.lane.b32.xlu0 %v1882, 125
    %v2191 = vpop.permute.xlu0 %2190
    %2192 = vrot.lane.b32.xlu0 %v1883, 125
    %v2193 = vpop.permute.xlu0 %2192
    %2194 = vrot.lane.b32.xlu0 %v1884, 125
    %v2195 = vpop.permute.xlu0 %2194
    %2196 = vrot.lane.b32.xlu0 %v1885, 125
    %v2197 = vpop.permute.xlu0 %2196
    %v2222 = vadd.f32 %v2126, %v2151
    %v2223 = vadd.f32 %v2127, %v2153
    %v2224 = vadd.f32 %v2128, %v2155
    %v2225 = vadd.f32 %v2129, %v2157
    %v2226 = vadd.f32 %v2130, %v2159
    %v2227 = vadd.f32 %v2131, %v2161
    %v2228 = vadd.f32 %v2132, %v2163
    %v2229 = vadd.f32 %v2133, %v2165
    %v2230 = vadd.f32 %v2134, %v2167
    %v2231 = vadd.f32 %v2135, %v2169
    %v2232 = vadd.f32 %v2136, %v2171
    %v2233 = vadd.f32 %v2137, %v2173
    %v2234 = vadd.f32 %v2138, %v2175
    %v2235 = vadd.f32 %v2139, %v2177
    %v2236 = vadd.f32 %v2140, %v2179
    %v2237 = vadd.f32 %v2141, %v2181
    %v2238 = vadd.f32 %v2142, %v2183
    %v2239 = vadd.f32 %v2143, %v2185
    %v2240 = vadd.f32 %v2144, %v2187
    %v2241 = vadd.f32 %v2145, %v2189
    %v2242 = vadd.f32 %v2146, %v2191
    %v2243 = vadd.f32 %v2147, %v2193
    %v2244 = vadd.f32 %v2148, %v2195
    %v2245 = vadd.f32 %v2149, %v2197
    %2270 = vrot.lane.b32.xlu0 %v1838, 124
    %v2271 = vpop.permute.xlu0 %2270
    %2272 = vrot.lane.b32.xlu0 %v1839, 124
    %v2273 = vpop.permute.xlu0 %2272
    %2274 = vrot.lane.b32.xlu0 %v1840, 124
    %v2275 = vpop.permute.xlu0 %2274
    %2276 = vrot.lane.b32.xlu0 %v1841, 124
    %v2277 = vpop.permute.xlu0 %2276
    %2278 = vrot.lane.b32.xlu0 %v1842, 124
    %v2279 = vpop.permute.xlu0 %2278
    %2280 = vrot.lane.b32.xlu0 %v1843, 124
    %v2281 = vpop.permute.xlu0 %2280
    %2282 = vrot.lane.b32.xlu0 %v1844, 124
    %v2283 = vpop.permute.xlu0 %2282
    %2284 = vrot.lane.b32.xlu0 %v1845, 124
    %v2285 = vpop.permute.xlu0 %2284
    %2286 = vrot.lane.b32.xlu0 %v1846, 124
    %v2287 = vpop.permute.xlu0 %2286
    %2288 = vrot.lane.b32.xlu0 %v1847, 124
    %v2289 = vpop.permute.xlu0 %2288
    %2290 = vrot.lane.b32.xlu0 %v1848, 124
    %v2291 = vpop.permute.xlu0 %2290
    %2292 = vrot.lane.b32.xlu0 %v1849, 124
    %v2293 = vpop.permute.xlu0 %2292
    %2294 = vrot.lane.b32.xlu0 %v1850, 124
    %v2295 = vpop.permute.xlu0 %2294
    %2296 = vrot.lane.b32.xlu0 %v1851, 124
    %v2297 = vpop.permute.xlu0 %2296
    %2298 = vrot.lane.b32.xlu0 %v1852, 124
    %v2299 = vpop.permute.xlu0 %2298
    %2300 = vrot.lane.b32.xlu0 %v1853, 124
    %v2301 = vpop.permute.xlu0 %2300
    %2302 = vrot.lane.b32.xlu0 %v1854, 124
    %v2303 = vpop.permute.xlu0 %2302
    %2304 = vrot.lane.b32.xlu0 %v1855, 124
    %v2305 = vpop.permute.xlu0 %2304
    %2306 = vrot.lane.b32.xlu0 %v1856, 124
    %v2307 = vpop.permute.xlu0 %2306
    %2308 = vrot.lane.b32.xlu0 %v1857, 124
    %v2309 = vpop.permute.xlu0 %2308
    %2310 = vrot.lane.b32.xlu0 %v1858, 124
    %v2311 = vpop.permute.xlu0 %2310
    %2312 = vrot.lane.b32.xlu0 %v1859, 124
    %v2313 = vpop.permute.xlu0 %2312
    %2314 = vrot.lane.b32.xlu0 %v1860, 124
    %v2315 = vpop.permute.xlu0 %2314
    %2316 = vrot.lane.b32.xlu0 %v1861, 124
    %v2317 = vpop.permute.xlu0 %2316
    %v2342 = vadd.f32 %v2222, %v2271
    %v2343 = vadd.f32 %v2223, %v2273
    %v2344 = vadd.f32 %v2224, %v2275
    %v2345 = vadd.f32 %v2225, %v2277
    %v2346 = vadd.f32 %v2226, %v2279
    %v2347 = vadd.f32 %v2227, %v2281
    %v2348 = vadd.f32 %v2228, %v2283
    %v2349 = vadd.f32 %v2229, %v2285
    %v2350 = vadd.f32 %v2230, %v2287
    %v2351 = vadd.f32 %v2231, %v2289
    %v2352 = vadd.f32 %v2232, %v2291
    %v2353 = vadd.f32 %v2233, %v2293
    %v2354 = vadd.f32 %v2234, %v2295
    %v2355 = vadd.f32 %v2235, %v2297
    %v2356 = vadd.f32 %v2236, %v2299
    %v2357 = vadd.f32 %v2237, %v2301
    %v2358 = vadd.f32 %v2238, %v2303
    %v2359 = vadd.f32 %v2239, %v2305
    %v2360 = vadd.f32 %v2240, %v2307
    %v2361 = vadd.f32 %v2241, %v2309
    %v2362 = vadd.f32 %v2242, %v2311
    %v2363 = vadd.f32 %v2243, %v2313
    %v2364 = vadd.f32 %v2244, %v2315
    %v2365 = vadd.f32 %v2245, %v2317
    %v2366 = vmul.f32 %v1198, 0.5
    %v2367 = vmul.f32 %v1199, 0.5
    %v2368 = vmul.f32 %v1200, 0.5
    %v2369 = vmul.f32 %v1201, 0.5
    %v2370 = vmul.f32 %v1202, 0.5
    %v2371 = vmul.f32 %v1203, 0.5
    %v2372 = vmul.f32 %v1204, 0.5
    %v2373 = vmul.f32 %v1205, 0.5
    %v2374 = vmul.f32 %v1206, 0.5
    %v2375 = vmul.f32 %v1207, 0.5
    %v2376 = vmul.f32 %v1208, 0.5
    %v2377 = vmul.f32 %v1209, 0.5
    %v2378 = vmul.f32 %v1210, 0.5
    %v2379 = vmul.f32 %v1211, 0.5
    %v2380 = vmul.f32 %v1212, 0.5
    %v2381 = vmul.f32 %v1213, 0.5
    %v2382 = vmul.f32 %v1214, 0.5
    %v2383 = vmul.f32 %v1215, 0.5
    %v2384 = vmul.f32 %v1216, 0.5
    %v2385 = vmul.f32 %v1217, 0.5
    %v2386 = vmul.f32 %v1218, 0.5
    %v2387 = vmul.f32 %v1219, 0.5
    %v2388 = vmul.f32 %v1220, 0.5
    %v2389 = vmul.f32 %v1221, 0.5
    %v2390 = vadd.f32 %v9, %v2366
    %v2391 = vadd.f32 %v10, %v2367
    %v2392 = vadd.f32 %v11, %v2368
    %v2393 = vadd.f32 %v12, %v2369
    %v2394 = vadd.f32 %v13, %v2370
    %v2395 = vadd.f32 %v14, %v2371
    %v2396 = vadd.f32 %v15, %v2372
    %v2397 = vadd.f32 %v16, %v2373
    %v2398 = vadd.f32 %v17, %v2374
    %v2399 = vadd.f32 %v18, %v2375
    %v2400 = vadd.f32 %v19, %v2376
    %v2401 = vadd.f32 %v20, %v2377
    %v2402 = vadd.f32 %v21, %v2378
    %v2403 = vadd.f32 %v22, %v2379
    %v2404 = vadd.f32 %v23, %v2380
    %v2405 = vadd.f32 %v24, %v2381
    %v2406 = vadd.f32 %v25, %v2382
    %v2407 = vadd.f32 %v26, %v2383
    %v2408 = vadd.f32 %v27, %v2384
    %v2409 = vadd.f32 %v28, %v2385
    %v2410 = vadd.f32 %v29, %v2386
    %v2411 = vadd.f32 %v30, %v2387
    %v2412 = vadd.f32 %v31, %v2388
    %v2413 = vadd.f32 %v32, %v2389
    %v2414 = vmax.f32 %v2390, 0.0
    %v2415 = vmax.f32 %v2391, 0.0
    %v2416 = vmax.f32 %v2392, 0.0
    %v2417 = vmax.f32 %v2393, 0.0
    %v2418 = vmax.f32 %v2394, 0.0
    %v2419 = vmax.f32 %v2395, 0.0
    %v2420 = vmax.f32 %v2396, 0.0
    %v2421 = vmax.f32 %v2397, 0.0
    %v2422 = vmax.f32 %v2398, 0.0
    %v2423 = vmax.f32 %v2399, 0.0
    %v2424 = vmax.f32 %v2400, 0.0
    %v2425 = vmax.f32 %v2401, 0.0
    %v2426 = vmax.f32 %v2402, 0.0
    %v2427 = vmax.f32 %v2403, 0.0
    %v2428 = vmax.f32 %v2404, 0.0
    %v2429 = vmax.f32 %v2405, 0.0
    %v2430 = vmax.f32 %v2406, 0.0
    %v2431 = vmax.f32 %v2407, 0.0
    %v2432 = vmax.f32 %v2408, 0.0
    %v2433 = vmax.f32 %v2409, 0.0
    %v2434 = vmax.f32 %v2410, 0.0
    %v2435 = vmax.f32 %v2411, 0.0
    %v2436 = vmax.f32 %v2412, 0.0
    %v2437 = vmax.f32 %v2413, 0.0
    %v2438 = vmin.f32 %v2414, 1.0
    %v2439 = vmin.f32 %v2415, 1.0
    %v2440 = vmin.f32 %v2416, 1.0
    %v2441 = vmin.f32 %v2417, 1.0
    %v2442 = vmin.f32 %v2418, 1.0
    %v2443 = vmin.f32 %v2419, 1.0
    %v2444 = vmin.f32 %v2420, 1.0
    %v2445 = vmin.f32 %v2421, 1.0
    %v2446 = vmin.f32 %v2422, 1.0
    %v2447 = vmin.f32 %v2423, 1.0
    %v2448 = vmin.f32 %v2424, 1.0
    %v2449 = vmin.f32 %v2425, 1.0
    %v2450 = vmin.f32 %v2426, 1.0
    %v2451 = vmin.f32 %v2427, 1.0
    %v2452 = vmin.f32 %v2428, 1.0
    %v2453 = vmin.f32 %v2429, 1.0
    %v2454 = vmin.f32 %v2430, 1.0
    %v2455 = vmin.f32 %v2431, 1.0
    %v2456 = vmin.f32 %v2432, 1.0
    %v2457 = vmin.f32 %v2433, 1.0
    %v2458 = vmin.f32 %v2434, 1.0
    %v2459 = vmin.f32 %v2435, 1.0
    %v2460 = vmin.f32 %v2436, 1.0
    %v2461 = vmin.f32 %v2437, 1.0
    %v2486 = vrot.slane %v2438, 2
    %v2487 = vrot.slane %v2439, 2
    %v2488 = vsel %vm242, %v2486, %v2487
    %v2489 = vrot.slane %v2440, 2
    %v2490 = vsel %vm242, %v2487, %v2489
    %v2491 = vrot.slane %v2441, 2
    %v2492 = vrot.slane %v2442, 2
    %v2493 = vsel %vm242, %v2491, %v2492
    %v2494 = vrot.slane %v2443, 2
    %v2495 = vsel %vm242, %v2492, %v2494
    %v2496 = vrot.slane %v2444, 2
    %v2497 = vrot.slane %v2445, 2
    %v2498 = vsel %vm242, %v2496, %v2497
    %v2499 = vrot.slane %v2446, 2
    %v2500 = vsel %vm242, %v2497, %v2499
    %v2501 = vrot.slane %v2447, 2
    %v2502 = vrot.slane %v2448, 2
    %v2503 = vsel %vm242, %v2501, %v2502
    %v2504 = vrot.slane %v2449, 2
    %v2505 = vsel %vm242, %v2502, %v2504
    %v2506 = vrot.slane %v2450, 2
    %v2507 = vrot.slane %v2451, 2
    %v2508 = vsel %vm242, %v2506, %v2507
    %v2509 = vrot.slane %v2452, 2
    %v2510 = vsel %vm242, %v2507, %v2509
    %v2511 = vrot.slane %v2453, 2
    %v2512 = vrot.slane %v2454, 2
    %v2513 = vsel %vm242, %v2511, %v2512
    %v2514 = vrot.slane %v2455, 2
    %v2515 = vsel %vm242, %v2512, %v2514
    %v2516 = vrot.slane %v2456, 2
    %v2517 = vrot.slane %v2457, 2
    %v2518 = vsel %vm242, %v2516, %v2517
    %v2519 = vrot.slane %v2458, 2
    %v2520 = vsel %vm242, %v2517, %v2519
    %v2521 = vrot.slane %v2459, 2
    %v2522 = vrot.slane %v2460, 2
    %v2523 = vsel %vm242, %v2521, %v2522
    %v2524 = vrot.slane %v2461, 2
    %v2525 = vsel %vm242, %v2522, %v2524
    %2526 = vrot.lane.b32.xlu0 %v2488, 126
    %v2527 = vpop.permute.xlu0 %2526
    %2528 = vrot.lane.b32.xlu0 %v2490, 126
    %v2529 = vpop.permute.xlu0 %2528
    %2530 = vrot.lane.b32.xlu0 %v2489, 126
    %v2531 = vpop.permute.xlu0 %2530
    %2532 = vrot.lane.b32.xlu0 %v2493, 126
    %v2533 = vpop.permute.xlu0 %2532
    %2534 = vrot.lane.b32.xlu0 %v2495, 126
    %v2535 = vpop.permute.xlu0 %2534
    %2536 = vrot.lane.b32.xlu0 %v2494, 126
    %v2537 = vpop.permute.xlu0 %2536
    %2538 = vrot.lane.b32.xlu0 %v2498, 126
    %v2539 = vpop.permute.xlu0 %2538
    %2540 = vrot.lane.b32.xlu0 %v2500, 126
    %v2541 = vpop.permute.xlu0 %2540
    %2542 = vrot.lane.b32.xlu0 %v2499, 126
    %v2543 = vpop.permute.xlu0 %2542
    %2544 = vrot.lane.b32.xlu0 %v2503, 126
    %v2545 = vpop.permute.xlu0 %2544
    %2546 = vrot.lane.b32.xlu0 %v2505, 126
    %v2547 = vpop.permute.xlu0 %2546
    %2548 = vrot.lane.b32.xlu0 %v2504, 126
    %v2549 = vpop.permute.xlu0 %2548
    %2550 = vrot.lane.b32.xlu0 %v2508, 126
    %v2551 = vpop.permute.xlu0 %2550
    %2552 = vrot.lane.b32.xlu0 %v2510, 126
    %v2553 = vpop.permute.xlu0 %2552
    %2554 = vrot.lane.b32.xlu0 %v2509, 126
    %v2555 = vpop.permute.xlu0 %2554
    %2556 = vrot.lane.b32.xlu0 %v2513, 126
    %v2557 = vpop.permute.xlu0 %2556
    %2558 = vrot.lane.b32.xlu0 %v2515, 126
    %v2559 = vpop.permute.xlu0 %2558
    %2560 = vrot.lane.b32.xlu0 %v2514, 126
    %v2561 = vpop.permute.xlu0 %2560
    %2562 = vrot.lane.b32.xlu0 %v2518, 126
    %v2563 = vpop.permute.xlu0 %2562
    %2564 = vrot.lane.b32.xlu0 %v2520, 126
    %v2565 = vpop.permute.xlu0 %2564
    %2566 = vrot.lane.b32.xlu0 %v2519, 126
    %v2567 = vpop.permute.xlu0 %2566
    %2568 = vrot.lane.b32.xlu0 %v2523, 126
    %v2569 = vpop.permute.xlu0 %2568
    %2570 = vrot.lane.b32.xlu0 %v2525, 126
    %v2571 = vpop.permute.xlu0 %2570
    %2572 = vrot.lane.b32.xlu0 %v2524, 126
    %v2573 = vpop.permute.xlu0 %2572
    %v2598 = vmul.f32 %v2342, %v2527
    %v2599 = vmul.f32 %v2343, %v2529
    %v2600 = vmul.f32 %v2344, %v2531
    %v2601 = vmul.f32 %v2345, %v2533
    %v2602 = vmul.f32 %v2346, %v2535
    %v2603 = vmul.f32 %v2347, %v2537
    %v2604 = vmul.f32 %v2348, %v2539
    %v2605 = vmul.f32 %v2349, %v2541
    %v2606 = vmul.f32 %v2350, %v2543
    %v2607 = vmul.f32 %v2351, %v2545
    %v2608 = vmul.f32 %v2352, %v2547
    %v2609 = vmul.f32 %v2353, %v2549
    %v2610 = vmul.f32 %v2354, %v2551
    %v2611 = vmul.f32 %v2355, %v2553
    %v2612 = vmul.f32 %v2356, %v2555
    %v2613 = vmul.f32 %v2357, %v2557
    %v2614 = vmul.f32 %v2358, %v2559
    %v2615 = vmul.f32 %v2359, %v2561
    %v2616 = vmul.f32 %v2360, %v2563
    %v2617 = vmul.f32 %v2361, %v2565
    %v2618 = vmul.f32 %v2362, %v2567
    %v2619 = vmul.f32 %v2363, %v2569
    %v2620 = vmul.f32 %v2364, %v2571
    %v2621 = vmul.f32 %v2365, %v2573
    %v2622 = vsub.f32 1.0, %v2342
    %v2623 = vsub.f32 1.0, %v2343
    %v2624 = vsub.f32 1.0, %v2344
    %v2625 = vsub.f32 1.0, %v2345
    %v2626 = vsub.f32 1.0, %v2346
    %v2627 = vsub.f32 1.0, %v2347
    %v2628 = vsub.f32 1.0, %v2348
    %v2629 = vsub.f32 1.0, %v2349
    %v2630 = vsub.f32 1.0, %v2350
    %v2631 = vsub.f32 1.0, %v2351
    %v2632 = vsub.f32 1.0, %v2352
    %v2633 = vsub.f32 1.0, %v2353
    %v2634 = vsub.f32 1.0, %v2354
    %v2635 = vsub.f32 1.0, %v2355
    %v2636 = vsub.f32 1.0, %v2356
    %v2637 = vsub.f32 1.0, %v2357
    %v2638 = vsub.f32 1.0, %v2358
    %v2639 = vsub.f32 1.0, %v2359
    %v2640 = vsub.f32 1.0, %v2360
    %v2641 = vsub.f32 1.0, %v2361
    %v2642 = vsub.f32 1.0, %v2362
    %v2643 = vsub.f32 1.0, %v2363
    %v2644 = vsub.f32 1.0, %v2364
    %v2645 = vsub.f32 1.0, %v2365
    %v2670 = vrot.slane %v9, 2
    %v2671 = vrot.slane %v10, 2
    %v2672 = vsel %vm242, %v2670, %v2671
    %v2673 = vrot.slane %v11, 2
    %v2674 = vsel %vm242, %v2671, %v2673
    %v2675 = vrot.slane %v12, 2
    %v2676 = vrot.slane %v13, 2
    %v2677 = vsel %vm242, %v2675, %v2676
    %v2678 = vrot.slane %v14, 2
    %v2679 = vsel %vm242, %v2676, %v2678
    %v2680 = vrot.slane %v15, 2
    %v2681 = vrot.slane %v16, 2
    %v2682 = vsel %vm242, %v2680, %v2681
    %v2683 = vrot.slane %v17, 2
    %v2684 = vsel %vm242, %v2681, %v2683
    %v2685 = vrot.slane %v18, 2
    %v2686 = vrot.slane %v19, 2
    %v2687 = vsel %vm242, %v2685, %v2686
    %v2688 = vrot.slane %v20, 2
    %v2689 = vsel %vm242, %v2686, %v2688
    %v2690 = vrot.slane %v21, 2
    %v2691 = vrot.slane %v22, 2
    %v2692 = vsel %vm242, %v2690, %v2691
    %v2693 = vrot.slane %v23, 2
    %v2694 = vsel %vm242, %v2691, %v2693
    %v2695 = vrot.slane %v24, 2
    %v2696 = vrot.slane %v25, 2
    %v2697 = vsel %vm242, %v2695, %v2696
    %v2698 = vrot.slane %v26, 2
    %v2699 = vsel %vm242, %v2696, %v2698
    %v2700 = vrot.slane %v27, 2
    %v2701 = vrot.slane %v28, 2
    %v2702 = vsel %vm242, %v2700, %v2701
    %v2703 = vrot.slane %v29, 2
    %v2704 = vsel %vm242, %v2701, %v2703
    %v2705 = vrot.slane %v30, 2
    %v2706 = vrot.slane %v31, 2
    %v2707 = vsel %vm242, %v2705, %v2706
    %v2708 = vrot.slane %v32, 2
    %v2709 = vsel %vm242, %v2706, %v2708
    %2710 = vrot.lane.b32.xlu0 %v2672, 126
    %v2711 = vpop.permute.xlu0 %2710
    %2712 = vrot.lane.b32.xlu0 %v2674, 126
    %v2713 = vpop.permute.xlu0 %2712
    %2714 = vrot.lane.b32.xlu0 %v2673, 126
    %v2715 = vpop.permute.xlu0 %2714
    %2716 = vrot.lane.b32.xlu0 %v2677, 126
    %v2717 = vpop.permute.xlu0 %2716
    %2718 = vrot.lane.b32.xlu0 %v2679, 126
    %v2719 = vpop.permute.xlu0 %2718
    %2720 = vrot.lane.b32.xlu0 %v2678, 126
    %v2721 = vpop.permute.xlu0 %2720
    %2722 = vrot.lane.b32.xlu0 %v2682, 126
    %v2723 = vpop.permute.xlu0 %2722
    %2724 = vrot.lane.b32.xlu0 %v2684, 126
    %v2725 = vpop.permute.xlu0 %2724
    %2726 = vrot.lane.b32.xlu0 %v2683, 126
    %v2727 = vpop.permute.xlu0 %2726
    %2728 = vrot.lane.b32.xlu0 %v2687, 126
    %v2729 = vpop.permute.xlu0 %2728
    %2730 = vrot.lane.b32.xlu0 %v2689, 126
    %v2731 = vpop.permute.xlu0 %2730
    %2732 = vrot.lane.b32.xlu0 %v2688, 126
    %v2733 = vpop.permute.xlu0 %2732
    %2734 = vrot.lane.b32.xlu0 %v2692, 126
    %v2735 = vpop.permute.xlu0 %2734
    %2736 = vrot.lane.b32.xlu0 %v2694, 126
    %v2737 = vpop.permute.xlu0 %2736
    %2738 = vrot.lane.b32.xlu0 %v2693, 126
    %v2739 = vpop.permute.xlu0 %2738
    %2740 = vrot.lane.b32.xlu0 %v2697, 126
    %v2741 = vpop.permute.xlu0 %2740
    %2742 = vrot.lane.b32.xlu0 %v2699, 126
    %v2743 = vpop.permute.xlu0 %2742
    %2744 = vrot.lane.b32.xlu0 %v2698, 126
    %v2745 = vpop.permute.xlu0 %2744
    %2746 = vrot.lane.b32.xlu0 %v2702, 126
    %v2747 = vpop.permute.xlu0 %2746
    %2748 = vrot.lane.b32.xlu0 %v2704, 126
    %v2749 = vpop.permute.xlu0 %2748
    %2750 = vrot.lane.b32.xlu0 %v2703, 126
    %v2751 = vpop.permute.xlu0 %2750
    %2752 = vrot.lane.b32.xlu0 %v2707, 126
    %v2753 = vpop.permute.xlu0 %2752
    %2754 = vrot.lane.b32.xlu0 %v2709, 126
    %v2755 = vpop.permute.xlu0 %2754
    %2756 = vrot.lane.b32.xlu0 %v2708, 126
    %v2757 = vpop.permute.xlu0 %2756
    %v2782 = vmul.f32 %v2622, %v2711
    %v2783 = vmul.f32 %v2623, %v2713
    %v2784 = vmul.f32 %v2624, %v2715
    %v2785 = vmul.f32 %v2625, %v2717
    %v2786 = vmul.f32 %v2626, %v2719
    %v2787 = vmul.f32 %v2627, %v2721
    %v2788 = vmul.f32 %v2628, %v2723
    %v2789 = vmul.f32 %v2629, %v2725
    %v2790 = vmul.f32 %v2630, %v2727
    %v2791 = vmul.f32 %v2631, %v2729
    %v2792 = vmul.f32 %v2632, %v2731
    %v2793 = vmul.f32 %v2633, %v2733
    %v2794 = vmul.f32 %v2634, %v2735
    %v2795 = vmul.f32 %v2635, %v2737
    %v2796 = vmul.f32 %v2636, %v2739
    %v2797 = vmul.f32 %v2637, %v2741
    %v2798 = vmul.f32 %v2638, %v2743
    %v2799 = vmul.f32 %v2639, %v2745
    %v2800 = vmul.f32 %v2640, %v2747
    %v2801 = vmul.f32 %v2641, %v2749
    %v2802 = vmul.f32 %v2642, %v2751
    %v2803 = vmul.f32 %v2643, %v2753
    %v2804 = vmul.f32 %v2644, %v2755
    %v2805 = vmul.f32 %v2645, %v2757
    %v2806 = vadd.f32 %v2598, %v2782
    %v2807 = vadd.f32 %v2599, %v2783
    %v2808 = vadd.f32 %v2600, %v2784
    %v2809 = vadd.f32 %v2601, %v2785
    %v2810 = vadd.f32 %v2602, %v2786
    %v2811 = vadd.f32 %v2603, %v2787
    %v2812 = vadd.f32 %v2604, %v2788
    %v2813 = vadd.f32 %v2605, %v2789
    %v2814 = vadd.f32 %v2606, %v2790
    %v2815 = vadd.f32 %v2607, %v2791
    %v2816 = vadd.f32 %v2608, %v2792
    %v2817 = vadd.f32 %v2609, %v2793
    %v2818 = vadd.f32 %v2610, %v2794
    %v2819 = vadd.f32 %v2611, %v2795
    %v2820 = vadd.f32 %v2612, %v2796
    %v2821 = vadd.f32 %v2613, %v2797
    %v2822 = vadd.f32 %v2614, %v2798
    %v2823 = vadd.f32 %v2615, %v2799
    %v2824 = vadd.f32 %v2616, %v2800
    %v2825 = vadd.f32 %v2617, %v2801
    %v2826 = vadd.f32 %v2618, %v2802
    %v2827 = vadd.f32 %v2619, %v2803
    %v2828 = vadd.f32 %v2620, %v2804
    %v2829 = vadd.f32 %v2621, %v2805
    %2854 = vrot.lane.b32.xlu0 %v2806, 126
    %v2855 = vpop.permute.xlu0 %2854
    %2856 = vrot.lane.b32.xlu0 %v2807, 126
    %v2857 = vpop.permute.xlu0 %2856
    %2858 = vrot.lane.b32.xlu0 %v2808, 126
    %v2859 = vpop.permute.xlu0 %2858
    %2860 = vrot.lane.b32.xlu0 %v2809, 126
    %v2861 = vpop.permute.xlu0 %2860
    %2862 = vrot.lane.b32.xlu0 %v2810, 126
    %v2863 = vpop.permute.xlu0 %2862
    %2864 = vrot.lane.b32.xlu0 %v2811, 126
    %v2865 = vpop.permute.xlu0 %2864
    %2866 = vrot.lane.b32.xlu0 %v2812, 126
    %v2867 = vpop.permute.xlu0 %2866
    %2868 = vrot.lane.b32.xlu0 %v2813, 126
    %v2869 = vpop.permute.xlu0 %2868
    %2870 = vrot.lane.b32.xlu0 %v2814, 126
    %v2871 = vpop.permute.xlu0 %2870
    %2872 = vrot.lane.b32.xlu0 %v2815, 126
    %v2873 = vpop.permute.xlu0 %2872
    %2874 = vrot.lane.b32.xlu0 %v2816, 126
    %v2875 = vpop.permute.xlu0 %2874
    %2876 = vrot.lane.b32.xlu0 %v2817, 126
    %v2877 = vpop.permute.xlu0 %2876
    %2878 = vrot.lane.b32.xlu0 %v2818, 126
    %v2879 = vpop.permute.xlu0 %2878
    %2880 = vrot.lane.b32.xlu0 %v2819, 126
    %v2881 = vpop.permute.xlu0 %2880
    %2882 = vrot.lane.b32.xlu0 %v2820, 126
    %v2883 = vpop.permute.xlu0 %2882
    %2884 = vrot.lane.b32.xlu0 %v2821, 126
    %v2885 = vpop.permute.xlu0 %2884
    %2886 = vrot.lane.b32.xlu0 %v2822, 126
    %v2887 = vpop.permute.xlu0 %2886
    %2888 = vrot.lane.b32.xlu0 %v2823, 126
    %v2889 = vpop.permute.xlu0 %2888
    %2890 = vrot.lane.b32.xlu0 %v2824, 126
    %v2891 = vpop.permute.xlu0 %2890
    %2892 = vrot.lane.b32.xlu0 %v2825, 126
    %v2893 = vpop.permute.xlu0 %2892
    %2894 = vrot.lane.b32.xlu0 %v2826, 126
    %v2895 = vpop.permute.xlu0 %2894
    %2896 = vrot.lane.b32.xlu0 %v2827, 126
    %v2897 = vpop.permute.xlu0 %2896
    %2898 = vrot.lane.b32.xlu0 %v2828, 126
    %v2899 = vpop.permute.xlu0 %2898
    %2900 = vrot.lane.b32.xlu0 %v2829, 126
    %v2901 = vpop.permute.xlu0 %2900
    %vm2926 = vcmask 130050
    %2927 = vst.msk [vmem:[#allocation2 - $0x2] sm:$0xfc] %vm2926, %v2855
    %vm2928 = vcmask 130048
    %2929 = vst.msk [vmem:[#allocation2 + $0x6] sm:$0xff] %vm2928, %v2857
    %vm2930 = vcmask 123904
    %2931 = vst.msk [vmem:[#allocation2 + $0xe] sm:$0x3] %vm2930, %v2859
    %2932 = vst.msk [vmem:[#allocation2 + $0xe] sm:$0xfc] %vm2926, %v2861
    %2933 = vst.msk [vmem:[#allocation2 + $0x16] sm:$0xff] %vm2928, %v2863
    %2934 = vst.msk [vmem:[#allocation2 + $0x1e] sm:$0x3] %vm2930, %v2865
    %2935 = vst.msk [vmem:[#allocation2 + $0x1e] sm:$0xfc] %vm2926, %v2867
    %2936 = vst.msk [vmem:[#allocation2 + $0x26] sm:$0xff] %vm2928, %v2869
    %2937 = vst.msk [vmem:[#allocation2 + $0x2e] sm:$0x3] %vm2930, %v2871
    %2938 = vst.msk [vmem:[#allocation2 + $0x2e] sm:$0xfc] %vm2926, %v2873
    %2939 = vst.msk [vmem:[#allocation2 + $0x36] sm:$0xff] %vm2928, %v2875
    %2940 = vst.msk [vmem:[#allocation2 + $0x3e] sm:$0x3] %vm2930, %v2877
    %2941 = vst.msk [vmem:[#allocation2 + $0x3e] sm:$0xfc] %vm2926, %v2879
    %2942 = vst.msk [vmem:[#allocation2 + $0x46] sm:$0xff] %vm2928, %v2881
    %2943 = vst.msk [vmem:[#allocation2 + $0x4e] sm:$0x3] %vm2930, %v2883
    %2944 = vst.msk [vmem:[#allocation2 + $0x4e] sm:$0xfc] %vm2926, %v2885
    %2945 = vst.msk [vmem:[#allocation2 + $0x56] sm:$0xff] %vm2928, %v2887
    %2946 = vst.msk [vmem:[#allocation2 + $0x5e] sm:$0x3] %vm2930, %v2889
    %2947 = vst.msk [vmem:[#allocation2 + $0x5e] sm:$0xfc] %vm2926, %v2891
    %2948 = vst.msk [vmem:[#allocation2 + $0x66] sm:$0xff] %vm2928, %v2893
    %2949 = vst.msk [vmem:[#allocation2 + $0x6e] sm:$0x3] %vm2930, %v2895
    %2950 = vst.msk [vmem:[#allocation2 + $0x6e] sm:$0xfc] %vm2926, %v2897
    %2951 = vst.msk [vmem:[#allocation2 + $0x76] sm:$0xff] %vm2928, %v2899
    %2952 = vst.msk [vmem:[#allocation2 + $0x7e] sm:$0x3] %vm2930, %v2901
    // Predicated region
    $region6: #{usm_sharp.1} parent=1 // pred_check
      _
    $region7: #{usm_sharp.1} parent=1 // pred_check_branch
      %2954 = sbr.rel (0) target = $region9
    $region8: #{usm_sharp.1} parent=1 // pred_region
      %s2956 = ssub.s32 2048, 2048
      %2957 = vsyncadd [#allocation3], %s2956
      %s2958 = sshll.u32 [#allocation2], 4
      %s2959 = int_to_ptr.vmem [resolvable:$true] %s2958
      %2964 = dma.vmem_to_hbm [thread:$0]  %s2959, 2048, %s1, [#allocation3], 128, 128, 8
    $region9: #{usm_sharp.1} parent=1 // pred_fallthru
      _
    // Predicated region
    $region10: #{usm_sharp.1} parent=1 // pred_check
      _
    $region11: #{usm_sharp.1} parent=1 // pred_check_branch
      %2966 = sbr.rel (0) target = $region13
    $region12: #{usm_sharp.1} parent=1 // pred_region
      %2967 = dma.done [#allocation3], 2048
    $region13: #{usm_sharp.1} parent=1 // pred_fallthru
      _
    %2968 = vsyncpa [#allocation3], 1

</llo_original>
